<compile_context>
chip_gen: v6e
topology: v6e:2x2x1
jax: 0.10.0
libtpu: 0.0.40
codegen_flags: <defaults>
</compile_context>

<pallas_src>
import functools

import jax
import jax.numpy as jnp
from jax import lax
from jax.experimental import pallas as pl
from jax.experimental.pallas import tpu as pltpu


def _round_up(x, m):
    return ((x + m - 1) // m) * m


# -----------------------------------------------------------------------------
# Pallas kernel: GRU recurrence over precomputed input gates + output head.
# -----------------------------------------------------------------------------
def gru_head_kernel(gi_ref, len_ref, whh_ref, bhn_ref, wlin_ref, blin_ref,
                    o_ref, h_ref):
    """
    gi_ref  : (t_chunk, 3, B, H) f32  precomputed x@W_ih + b_ih (+ folded b_hr/b_hz)
    len_ref : (B, 1) int32            true sequence lengths (resident)
    whh_ref : (3, H, H) f32           recurrent weights, laid out for h @ W
    bhn_ref : (1, H) f32              recurrent bias of the n gate
    wlin_ref: (H, O_pad) f32          output projection (lane-padded)
    blin_ref: (1, O_pad) f32
    o_ref   : (B, O_pad) f32          L2-normalized encoder output
    h_ref   : (B, H) f32              VMEM scratch hidden-state accumulator
    """
    ti = pl.program_id(0)
    nt = pl.num_programs(0)
    t_chunk = gi_ref.shape[0]
    B, H = h_ref.shape

    @pl.when(ti == 0)
    def _init():
        h_ref[...] = jnp.zeros_like(h_ref)

    # Hoist loop-invariant loads / broadcasts off the serial critical path.
    len_b = jnp.broadcast_to(len_ref[...], (B, H))       # (B, H) int32
    w_hr = whh_ref[0]
    w_hz = whh_ref[1]
    w_hn = whh_ref[2]
    b_hn = jnp.broadcast_to(bhn_ref[...], (B, H))

    def step(s, h):
        t = ti * t_chunk + s
        g_t = gi_ref[s]                                  # (3, B, H) full slabs
        h_r = jnp.dot(h, w_hr, preferred_element_type=jnp.float32)
        h_z = jnp.dot(h, w_hz, preferred_element_type=jnp.float32)
        h_n = jnp.dot(h, w_hn, preferred_element_type=jnp.float32) + b_hn
        # PyTorch GRU gate order: r, z, n
        r = jax.nn.sigmoid(g_t[0] + h_r)
        z = jax.nn.sigmoid(g_t[1] + h_z)
        n = jnp.tanh(g_t[2] + r * h_n)
        h_new = (1.0 - z) * n + z * h
        # padded timesteps carry the previous hidden state
        return jnp.where(t < len_b, h_new, h)

    h = lax.fori_loop(0, t_chunk, step, h_ref[...], unroll=True)
    h_ref[...] = h

    @pl.when(ti == nt - 1)
    def _finalize():
        h_relu = jnp.maximum(h, 0.0)
        out = jnp.dot(h_relu, wlin_ref[...],
                      preferred_element_type=jnp.float32) + blin_ref[...]
        ssq = jnp.sum(out * out, axis=1, keepdims=True)
        o_ref[...] = out * lax.rsqrt(ssq + 1e-12)        # EUP rsqrt + eps


# -----------------------------------------------------------------------------
# Wrapper: JAX glue (gather + hoisted input projection) and the pallas_call.
# -----------------------------------------------------------------------------
def _prepare_operands(tokens, lengths, params, t_chunk):
    """Pad shapes to TPU-friendly sizes and hoist the input projection."""
    B, T = tokens.shape
    E = params["embed"].shape[1]
    H = params["w_hh"].shape[1]
    out_dim = params["w_lin"].shape[0]

    B_pad = _round_up(B, 8)                  # sublane-aligned batch
    t_chunk = max(1, min(t_chunk, T))
    T_pad = _round_up(T, t_chunk)
    O_pad = _round_up(out_dim, 128)          # lane-dense output stores

    tokens_p = jnp.zeros((B_pad, T_pad), jnp.int32).at[:B, :T].set(tokens)
    lengths2d = (jnp.zeros((B_pad,), jnp.int32).at[:B].set(lengths)
                 .reshape(B_pad, 1))

    # Embedding gather (JAX glue; dropout p=0 is identity).
    emb = jnp.take(params["embed"], tokens_p, axis=0)         # (B_pad, T_pad, E)

    # Hoisted input projection: ONE large bf16 MXU matmul for all timesteps.
    # b_hr / b_hz are folded into the precomputed gates; b_hn must stay inside
    # the recurrence because of the r * (h@W_hn + b_hn) coupling.
    w_ih_g = params["w_ih"].reshape(3, H, E).transpose(0, 2, 1)   # (3, E, H)
    b_ih_g = params["b_ih"].reshape(3, H)
    b_hh_g = params["b_hh"].reshape(3, H)
    bias = (b_ih_g + jnp.stack([b_hh_g[0], b_hh_g[1],
                                jnp.zeros_like(b_hh_g[2])])).reshape(1, 3, 1, H)
    gi = jnp.einsum("bte,geh->tgbh",
                    emb.astype(jnp.bfloat16), w_ih_g.astype(jnp.bfloat16),
                    preferred_element_type=jnp.float32) + bias   # (T_pad,3,B_pad,H)

    w_hh_g = params["w_hh"].reshape(3, H, H).transpose(0, 2, 1)   # (3, H, H)
    b_hn = b_hh_g[2].reshape(1, H)
    w_lin_p = jnp.zeros((H, O_pad), jnp.float32).at[:, :out_dim].set(
        params["w_lin"].T)
    b_lin_p = jnp.zeros((1, O_pad), jnp.float32).at[:, :out_dim].set(
        params["b_lin"])

    dims = dict(B=B, T=T, H=H, out_dim=out_dim, B_pad=B_pad, T_pad=T_pad,
                O_pad=O_pad, t_chunk=t_chunk)
    return (gi, lengths2d, w_hh_g, b_hn, w_lin_p, b_lin_p), dims


@functools.partial(jax.jit, static_argnames=("t_chunk",))
def rnn_word_encoder(tokens, lengths, params, *, t_chunk=8):
    """tokens: (B, T) int32 (0-padded);  lengths: (B,) int32."""
    ops, d = _prepare_operands(tokens, lengths, params, t_chunk)
    gi, lengths2d, w_hh_g, b_hn, w_lin_p, b_lin_p = ops
    B_pad, H, O_pad, tc = d["B_pad"], d["H"], d["O_pad"], d["t_chunk"]

    out = pl.pallas_call(
        gru_head_kernel,
        out_shape=jax.ShapeDtypeStruct((B_pad, O_pad), jnp.float32),
        grid_spec=pltpu.PrefetchScalarGridSpec(
            num_scalar_prefetch=0,
            grid=(d["T_pad"] // tc,),
            in_specs=[
                # streamed per time-chunk (double-buffered DMA)
                pl.BlockSpec((tc, 3, B_pad, H), lambda i: (i, 0, 0, 0)),
                # resident (constant block index -> no re-DMA)
                pl.BlockSpec((B_pad, 1), lambda i: (0, 0)),
                pl.BlockSpec((3, H, H), lambda i: (0, 0, 0)),
                pl.BlockSpec((1, H), lambda i: (0, 0)),
                pl.BlockSpec((H, O_pad), lambda i: (0, 0)),
                pl.BlockSpec((1, O_pad), lambda i: (0, 0)),
            ],
            out_specs=pl.BlockSpec((B_pad, O_pad), lambda i: (0, 0)),
            scratch_shapes=[pltpu.VMEM((B_pad, H), jnp.float32)],
        ),
        compiler_params=pltpu.CompilerParams(
            dimension_semantics=("arbitrary",)),
    )(gi, lengths2d, w_hh_g, b_hn, w_lin_p, b_lin_p)
    return out[:d["B"], :d["out_dim"]]


# -----------------------------------------------------------------------------
# Pure-JAX reference (same hoisted gates) for correctness check.
# -----------------------------------------------------------------------------
def rnn_word_encoder_reference(tokens, lengths, params, *, t_chunk=8):
    ops, d = _prepare_operands(tokens, lengths, params, t_chunk)
    gi, lengths2d, w_hh_g, b_hn, w_lin_p, b_lin_p = ops

    def step(h, inp):
        g_t, t = inp
        h_r = h @ w_hh_g[0]
        h_z = h @ w_hh_g[1]
        h_n = h @ w_hh_g[2] + b_hn
        r = jax.nn.sigmoid(g_t[0] + h_r)
        z = jax.nn.sigmoid(g_t[1] + h_z)
        n = jnp.tanh(g_t[2] + r * h_n)
        h_new = (1.0 - z) * n + z * h
        return jnp.where(t < lengths2d, h_new, h), None

    h0 = jnp.zeros((d["B_pad"], d["H"]), jnp.float32)
    h, _ = lax.scan(step, h0, (gi, jnp.arange(d["T_pad"])))
    out = jnp.maximum(h, 0.0) @ w_lin_p + b_lin_p
    out = out * lax.rsqrt(jnp.sum(out * out, axis=1, keepdims=True) + 1e-12)
    return out[:d["B"], :d["out_dim"]]


def init_params(key, vocab_size, embed_dim, hidden_dim, out_dim):
    """Deterministic synthetic init (PyTorch-style uniform ranges)."""
    ks = jax.random.split(key, 7)
    k = 1.0 / jnp.sqrt(hidden_dim)
    return {
        "embed": jax.random.normal(ks[0], (vocab_size, embed_dim), jnp.float32),
        "w_ih": jax.random.uniform(ks[1], (3 * hidden_dim, embed_dim),
                                   jnp.float32, -k, k),
        "w_hh": jax.random.uniform(ks[2], (3 * hidden_dim, hidden_dim),
                                   jnp.float32, -k, k),
        "b_ih": jax.random.uniform(ks[3], (3 * hidden_dim,), jnp.float32, -k, k),
        "b_hh": jax.random.uniform(ks[4], (3 * hidden_dim,), jnp.float32, -k, k),
        "w_lin": jax.random.uniform(ks[5], (out_dim, hidden_dim),
                                    jnp.float32, -k, k),
        "b_lin": jax.random.uniform(ks[6], (out_dim,), jnp.float32, -k, k),
    }


if __name__ == "__main__":
    VOCAB, EMBED, HIDDEN, OUT_DIM = 50, 32, 64, 16   # module defaults: H=64, E=32
    B, T = 8, 8

    key = jax.random.PRNGKey(0)
    k_par, k_tok = jax.random.split(key)
    params = init_params(k_par, VOCAB, EMBED, HIDDEN, OUT_DIM)

    lengths = jnp.array([8, 5, 3, 6, 1, 8, 2, 7], dtype=jnp.int32)
    tokens = jax.random.randint(k_tok, (B, T), 1, VOCAB, dtype=jnp.int32)
    valid = jnp.arange(T)[None, :] < lengths[:, None]
    tokens = jnp.where(valid, tokens, 0)             # zero-out padding positions

    out = rnn_word_encoder(tokens, lengths, params, t_chunk=4)
    out = jax.block_until_ready(out)

    assert out.shape == (B, OUT_DIM)
    assert bool(jnp.all(jnp.isfinite(out)))
    # rows should be unit-norm
    assert bool(jnp.allclose(jnp.linalg.norm(out, axis=1), 1.0, atol=1e-4))

    ref = rnn_word_encoder_reference(tokens, lengths, params, t_chunk=4)
    assert bool(jnp.allclose(out, ref, atol=1e-3, rtol=1e-3)), (
        "max abs diff vs reference: %f" % float(jnp.max(jnp.abs(out - ref))))

    print("KERNEL_OK")
</pallas_src>

<mosaic_0001>
module attributes {stable_mosaic.version = 11 : i64} {
  func.func @gru_head_kernel(%arg0: i32, %arg1: memref<4x3x8x64xf32, #tpu.memory_space<vmem>>, %arg2: memref<8x1xi32, #tpu.memory_space<vmem>>, %arg3: memref<3x64x64xf32, #tpu.memory_space<vmem>>, %arg4: memref<1x64xf32, #tpu.memory_space<vmem>>, %arg5: memref<64x128xf32, #tpu.memory_space<vmem>>, %arg6: memref<1x128xf32, #tpu.memory_space<vmem>>, %arg7: memref<8x128xf32, #tpu.memory_space<vmem>>, %arg8: memref<8x64xf32, #tpu.memory_space<vmem>>) attributes {dimension_semantics = [#tpu.dimension_semantics<arbitrary>], iteration_bounds = array<i64: 2>, scalar_prefetch = 0 : i64, scratch_operands = 1 : i64, tpu.core_type = #tpu.core_type<tc>, window_params = [{transform_indices = @transform_0, window_bounds = array<i64: 4, 3, 8, 64>}, {pipeline_mode = #tpu.pipeline_mode<synchronous>, transform_indices = @transform_1, window_bounds = array<i64: 8, 1>}, {pipeline_mode = #tpu.pipeline_mode<synchronous>, transform_indices = @transform_2, window_bounds = array<i64: 3, 64, 64>}, {pipeline_mode = #tpu.pipeline_mode<synchronous>, transform_indices = @transform_3, window_bounds = array<i64: 1, 64>}, {pipeline_mode = #tpu.pipeline_mode<synchronous>, transform_indices = @transform_4, window_bounds = array<i64: 64, 128>}, {pipeline_mode = #tpu.pipeline_mode<synchronous>, transform_indices = @transform_5, window_bounds = array<i64: 1, 128>}, {pipeline_mode = #tpu.pipeline_mode<synchronous>, transform_indices = @transform_6, window_bounds = array<i64: 8, 128>}]} {
    %c0_i32 = arith.constant 0 : i32
    %0 = arith.cmpi eq, %arg0, %c0_i32 : i32
    %1 = arith.extui %0 : i1 to i32
    %c0_i32_0 = arith.constant 0 : i32
    %2 = arith.cmpi ne, %1, %c0_i32_0 : i32
    scf.if %2 {
      %cst_57 = arith.constant 0.000000e+00 : f32
      %172 = vector.broadcast %cst_57 : f32 to vector<8x64xf32>
      %c0_58 = arith.constant 0 : index
      %c0_59 = arith.constant 0 : index
      %173 = vector.load %arg8[%c0_58, %c0_59] : memref<8x64xf32, #tpu.memory_space<vmem>>, vector<8x64xf32>
      tpu.vector_store %arg8[%c0_58, %c0_59], %172 {strides = array<i32>} : memref<8x64xf32, #tpu.memory_space<vmem>>, vector<8x64xf32>,
    } else {
    }
    %c0 = arith.constant 0 : index
    %c0_1 = arith.constant 0 : index
    %3 = vector.load %arg2[%c0, %c0_1] : memref<8x1xi32, #tpu.memory_space<vmem>>, vector<8x1xi32>
    %4 = vector.shape_cast %3 : vector<8x1xi32> to vector<8x1xi32>
    %5 = vector.broadcast %4 : vector<8x1xi32> to vector<8x64xi32>
    %c0_2 = arith.constant 0 : index
    %c0_3 = arith.constant 0 : index
    %c0_4 = arith.constant 0 : index
    %6 = vector.load %arg3[%c0_2, %c0_3, %c0_4] : memref<3x64x64xf32, #tpu.memory_space<vmem>>, vector<1x64x64xf32>
    %7 = vector.shape_cast %6 : vector<1x64x64xf32> to vector<64x64xf32>
    %c1 = arith.constant 1 : index
    %c0_5 = arith.constant 0 : index
    %c0_6 = arith.constant 0 : index
    %8 = vector.load %arg3[%c1, %c0_5, %c0_6] : memref<3x64x64xf32, #tpu.memory_space<vmem>>, vector<1x64x64xf32>
    %9 = vector.shape_cast %8 : vector<1x64x64xf32> to vector<64x64xf32>
    %c2 = arith.constant 2 : index
    %c0_7 = arith.constant 0 : index
    %c0_8 = arith.constant 0 : index
    %10 = vector.load %arg3[%c2, %c0_7, %c0_8] : memref<3x64x64xf32, #tpu.memory_space<vmem>>, vector<1x64x64xf32>
    %11 = vector.shape_cast %10 : vector<1x64x64xf32> to vector<64x64xf32>
    %c0_9 = arith.constant 0 : index
    %c0_10 = arith.constant 0 : index
    %12 = vector.load %arg4[%c0_9, %c0_10] : memref<1x64xf32, #tpu.memory_space<vmem>>, vector<1x64xf32>
    %13 = vector.shape_cast %12 : vector<1x64xf32> to vector<1x64xf32>
    %14 = vector.broadcast %13 : vector<1x64xf32> to vector<8x64xf32>
    %c0_11 = arith.constant 0 : index
    %c0_12 = arith.constant 0 : index
    %15 = vector.load %arg8[%c0_11, %c0_12] : memref<8x64xf32, #tpu.memory_space<vmem>>, vector<8x64xf32>
    %c0_i32_13 = arith.constant 0 : i32
    %c4_i32 = arith.constant 4 : i32
    %16 = arith.muli %arg0, %c4_i32 : i32
    %17 = arith.addi %16, %c0_i32_13 : i32
    %18 = arith.index_cast %c0_i32_13 : i32 to index
    %c0_14 = arith.constant 0 : index
    %c0_15 = arith.constant 0 : index
    %c0_16 = arith.constant 0 : index
    %19 = vector.load %arg1[%18, %c0_14, %c0_15, %c0_16] : memref<4x3x8x64xf32, #tpu.memory_space<vmem>>, vector<1x3x8x64xf32>
    %20 = vector.shape_cast %19 : vector<1x3x8x64xf32> to vector<3x8x64xf32>
    %cst = arith.constant dense<0.000000e+00> : vector<8x64xf32>
    %21 = tpu.matmul %15, %7, %cst {dimension_numbers = #tpu.dot_dimension_numbers<[1], [0], [0], [1], [0, 0, 1, 1], [], []>} : vector<8x64xf32>, vector<64x64xf32>, vector<8x64xf32> -> vector<8x64xf32>
    %cst_17 = arith.constant dense<0.000000e+00> : vector<8x64xf32>
    %22 = tpu.matmul %15, %9, %cst_17 {dimension_numbers = #tpu.dot_dimension_numbers<[1], [0], [0], [1], [0, 0, 1, 1], [], []>} : vector<8x64xf32>, vector<64x64xf32>, vector<8x64xf32> -> vector<8x64xf32>
    %cst_18 = arith.constant dense<0.000000e+00> : vector<8x64xf32>
    %23 = tpu.matmul %15, %11, %cst_18 {dimension_numbers = #tpu.dot_dimension_numbers<[1], [0], [0], [1], [0, 0, 1, 1], [], []>} : vector<8x64xf32>, vector<64x64xf32>, vector<8x64xf32> -> vector<8x64xf32>
    %24 = arith.addf %23, %14 : vector<8x64xf32>
    %25 = vector.extract_strided_slice %20 {offsets = [0, 0, 0], sizes = [1, 8, 64], strides = [1, 1, 1]} : vector<3x8x64xf32> to vector<1x8x64xf32>
    %26 = vector.shape_cast %25 : vector<1x8x64xf32> to vector<8x64xf32>
    %27 = arith.addf %26, %21 : vector<8x64xf32>
    %28 = arith.negf %27 : vector<8x64xf32>
    %29 = math.exp %28 : vector<8x64xf32>
    %cst_19 = arith.constant 1.000000e+00 : f32
    %30 = vector.broadcast %cst_19 : f32 to vector<8x64xf32>
    %31 = arith.addf %30, %29 : vector<8x64xf32>
    %32 = arith.divf %30, %31 : vector<8x64xf32>
    %33 = vector.extract_strided_slice %20 {offsets = [1, 0, 0], sizes = [1, 8, 64], strides = [1, 1, 1]} : vector<3x8x64xf32> to vector<1x8x64xf32>
    %34 = vector.shape_cast %33 : vector<1x8x64xf32> to vector<8x64xf32>
    %35 = arith.addf %34, %22 : vector<8x64xf32>
    %36 = arith.negf %35 : vector<8x64xf32>
    %37 = math.exp %36 : vector<8x64xf32>
    %cst_20 = arith.constant 1.000000e+00 : f32
    %38 = vector.broadcast %cst_20 : f32 to vector<8x64xf32>
    %39 = arith.addf %38, %37 : vector<8x64xf32>
    %40 = arith.divf %38, %39 : vector<8x64xf32>
    %41 = vector.extract_strided_slice %20 {offsets = [2, 0, 0], sizes = [1, 8, 64], strides = [1, 1, 1]} : vector<3x8x64xf32> to vector<1x8x64xf32>
    %42 = vector.shape_cast %41 : vector<1x8x64xf32> to vector<8x64xf32>
    %43 = arith.mulf %32, %24 : vector<8x64xf32>
    %44 = arith.addf %42, %43 : vector<8x64xf32>
    %45 = math.tanh %44 : vector<8x64xf32>
    %cst_21 = arith.constant 1.000000e+00 : f32
    %46 = vector.broadcast %cst_21 : f32 to vector<8x64xf32>
    %47 = arith.subf %46, %40 : vector<8x64xf32>
    %48 = arith.mulf %47, %45 : vector<8x64xf32>
    %49 = arith.mulf %40, %15 : vector<8x64xf32>
    %50 = arith.addf %48, %49 : vector<8x64xf32>
    %51 = vector.broadcast %17 : i32 to vector<8x64xi32>
    %52 = arith.cmpi slt, %51, %5 : vector<8x64xi32>
    %53 = arith.select %52, %50, %15 : vector<8x64xi1>, vector<8x64xf32>
    %c1_i32 = arith.constant 1 : i32
    %c4_i32_22 = arith.constant 4 : i32
    %54 = arith.muli %arg0, %c4_i32_22 : i32
    %55 = arith.addi %54, %c1_i32 : i32
    %56 = arith.index_cast %c1_i32 : i32 to index
    %c0_23 = arith.constant 0 : index
    %c0_24 = arith.constant 0 : index
    %c0_25 = arith.constant 0 : index
    %57 = vector.load %arg1[%56, %c0_23, %c0_24, %c0_25] : memref<4x3x8x64xf32, #tpu.memory_space<vmem>>, vector<1x3x8x64xf32>
    %58 = vector.shape_cast %57 : vector<1x3x8x64xf32> to vector<3x8x64xf32>
    %cst_26 = arith.constant dense<0.000000e+00> : vector<8x64xf32>
    %59 = tpu.matmul %53, %7, %cst_26 {dimension_numbers = #tpu.dot_dimension_numbers<[1], [0], [0], [1], [0, 0, 1, 1], [], []>} : vector<8x64xf32>, vector<64x64xf32>, vector<8x64xf32> -> vector<8x64xf32>
    %cst_27 = arith.constant dense<0.000000e+00> : vector<8x64xf32>
    %60 = tpu.matmul %53, %9, %cst_27 {dimension_numbers = #tpu.dot_dimension_numbers<[1], [0], [0], [1], [0, 0, 1, 1], [], []>} : vector<8x64xf32>, vector<64x64xf32>, vector<8x64xf32> -> vector<8x64xf32>
    %cst_28 = arith.constant dense<0.000000e+00> : vector<8x64xf32>
    %61 = tpu.matmul %53, %11, %cst_28 {dimension_numbers = #tpu.dot_dimension_numbers<[1], [0], [0], [1], [0, 0, 1, 1], [], []>} : vector<8x64xf32>, vector<64x64xf32>, vector<8x64xf32> -> vector<8x64xf32>
    %62 = arith.addf %61, %14 : vector<8x64xf32>
    %63 = vector.extract_strided_slice %58 {offsets = [0, 0, 0], sizes = [1, 8, 64], strides = [1, 1, 1]} : vector<3x8x64xf32> to vector<1x8x64xf32>
    %64 = vector.shape_cast %63 : vector<1x8x64xf32> to vector<8x64xf32>
    %65 = arith.addf %64, %59 : vector<8x64xf32>
    %66 = arith.negf %65 : vector<8x64xf32>
    %67 = math.exp %66 : vector<8x64xf32>
    %cst_29 = arith.constant 1.000000e+00 : f32
    %68 = vector.broadcast %cst_29 : f32 to vector<8x64xf32>
    %69 = arith.addf %68, %67 : vector<8x64xf32>
    %70 = arith.divf %68, %69 : vector<8x64xf32>
    %71 = vector.extract_strided_slice %58 {offsets = [1, 0, 0], sizes = [1, 8, 64], strides = [1, 1, 1]} : vector<3x8x64xf32> to vector<1x8x64xf32>
    %72 = vector.shape_cast %71 : vector<1x8x64xf32> to vector<8x64xf32>
    %73 = arith.addf %72, %60 : vector<8x64xf32>
    %74 = arith.negf %73 : vector<8x64xf32>
    %75 = math.exp %74 : vector<8x64xf32>
    %cst_30 = arith.constant 1.000000e+00 : f32
    %76 = vector.broadcast %cst_30 : f32 to vector<8x64xf32>
    %77 = arith.addf %76, %75 : vector<8x64xf32>
    %78 = arith.divf %76, %77 : vector<8x64xf32>
    %79 = vector.extract_strided_slice %58 {offsets = [2, 0, 0], sizes = [1, 8, 64], strides = [1, 1, 1]} : vector<3x8x64xf32> to vector<1x8x64xf32>
    %80 = vector.shape_cast %79 : vector<1x8x64xf32> to vector<8x64xf32>
    %81 = arith.mulf %70, %62 : vector<8x64xf32>
    %82 = arith.addf %80, %81 : vector<8x64xf32>
    %83 = math.tanh %82 : vector<8x64xf32>
    %cst_31 = arith.constant 1.000000e+00 : f32
    %84 = vector.broadcast %cst_31 : f32 to vector<8x64xf32>
    %85 = arith.subf %84, %78 : vector<8x64xf32>
    %86 = arith.mulf %85, %83 : vector<8x64xf32>
    %87 = arith.mulf %78, %53 : vector<8x64xf32>
    %88 = arith.addf %86, %87 : vector<8x64xf32>
    %89 = vector.broadcast %55 : i32 to vector<8x64xi32>
    %90 = arith.cmpi slt, %89, %5 : vector<8x64xi32>
    %91 = arith.select %90, %88, %53 : vector<8x64xi1>, vector<8x64xf32>
    %c2_i32 = arith.constant 2 : i32
    %c4_i32_32 = arith.constant 4 : i32
    %92 = arith.muli %arg0, %c4_i32_32 : i32
    %93 = arith.addi %92, %c2_i32 : i32
    %94 = arith.index_cast %c2_i32 : i32 to index
    %c0_33 = arith.constant 0 : index
    %c0_34 = arith.constant 0 : index
    %c0_35 = arith.constant 0 : index
    %95 = vector.load %arg1[%94, %c0_33, %c0_34, %c0_35] : memref<4x3x8x64xf32, #tpu.memory_space<vmem>>, vector<1x3x8x64xf32>
    %96 = vector.shape_cast %95 : vector<1x3x8x64xf32> to vector<3x8x64xf32>
    %cst_36 = arith.constant dense<0.000000e+00> : vector<8x64xf32>
    %97 = tpu.matmul %91, %7, %cst_36 {dimension_numbers = #tpu.dot_dimension_numbers<[1], [0], [0], [1], [0, 0, 1, 1], [], []>} : vector<8x64xf32>, vector<64x64xf32>, vector<8x64xf32> -> vector<8x64xf32>
    %cst_37 = arith.constant dense<0.000000e+00> : vector<8x64xf32>
    %98 = tpu.matmul %91, %9, %cst_37 {dimension_numbers = #tpu.dot_dimension_numbers<[1], [0], [0], [1], [0, 0, 1, 1], [], []>} : vector<8x64xf32>, vector<64x64xf32>, vector<8x64xf32> -> vector<8x64xf32>
    %cst_38 = arith.constant dense<0.000000e+00> : vector<8x64xf32>
    %99 = tpu.matmul %91, %11, %cst_38 {dimension_numbers = #tpu.dot_dimension_numbers<[1], [0], [0], [1], [0, 0, 1, 1], [], []>} : vector<8x64xf32>, vector<64x64xf32>, vector<8x64xf32> -> vector<8x64xf32>
    %100 = arith.addf %99, %14 : vector<8x64xf32>
    %101 = vector.extract_strided_slice %96 {offsets = [0, 0, 0], sizes = [1, 8, 64], strides = [1, 1, 1]} : vector<3x8x64xf32> to vector<1x8x64xf32>
    %102 = vector.shape_cast %101 : vector<1x8x64xf32> to vector<8x64xf32>
    %103 = arith.addf %102, %97 : vector<8x64xf32>
    %104 = arith.negf %103 : vector<8x64xf32>
    %105 = math.exp %104 : vector<8x64xf32>
    %cst_39 = arith.constant 1.000000e+00 : f32
    %106 = vector.broadcast %cst_39 : f32 to vector<8x64xf32>
    %107 = arith.addf %106, %105 : vector<8x64xf32>
    %108 = arith.divf %106, %107 : vector<8x64xf32>
    %109 = vector.extract_strided_slice %96 {offsets = [1, 0, 0], sizes = [1, 8, 64], strides = [1, 1, 1]} : vector<3x8x64xf32> to vector<1x8x64xf32>
    %110 = vector.shape_cast %109 : vector<1x8x64xf32> to vector<8x64xf32>
    %111 = arith.addf %110, %98 : vector<8x64xf32>
    %112 = arith.negf %111 : vector<8x64xf32>
    %113 = math.exp %112 : vector<8x64xf32>
    %cst_40 = arith.constant 1.000000e+00 : f32
    %114 = vector.broadcast %cst_40 : f32 to vector<8x64xf32>
    %115 = arith.addf %114, %113 : vector<8x64xf32>
    %116 = arith.divf %114, %115 : vector<8x64xf32>
    %117 = vector.extract_strided_slice %96 {offsets = [2, 0, 0], sizes = [1, 8, 64], strides = [1, 1, 1]} : vector<3x8x64xf32> to vector<1x8x64xf32>
    %118 = vector.shape_cast %117 : vector<1x8x64xf32> to vector<8x64xf32>
    %119 = arith.mulf %108, %100 : vector<8x64xf32>
    %120 = arith.addf %118, %119 : vector<8x64xf32>
    %121 = math.tanh %120 : vector<8x64xf32>
    %cst_41 = arith.constant 1.000000e+00 : f32
    %122 = vector.broadcast %cst_41 : f32 to vector<8x64xf32>
    %123 = arith.subf %122, %116 : vector<8x64xf32>
    %124 = arith.mulf %123, %121 : vector<8x64xf32>
    %125 = arith.mulf %116, %91 : vector<8x64xf32>
    %126 = arith.addf %124, %125 : vector<8x64xf32>
    %127 = vector.broadcast %93 : i32 to vector<8x64xi32>
    %128 = arith.cmpi slt, %127, %5 : vector<8x64xi32>
    %129 = arith.select %128, %126, %91 : vector<8x64xi1>, vector<8x64xf32>
    %c3_i32 = arith.constant 3 : i32
    %c4_i32_42 = arith.constant 4 : i32
    %130 = arith.muli %arg0, %c4_i32_42 : i32
    %131 = arith.addi %130, %c3_i32 : i32
    %132 = arith.index_cast %c3_i32 : i32 to index
    %c0_43 = arith.constant 0 : index
    %c0_44 = arith.constant 0 : index
    %c0_45 = arith.constant 0 : index
    %133 = vector.load %arg1[%132, %c0_43, %c0_44, %c0_45] : memref<4x3x8x64xf32, #tpu.memory_space<vmem>>, vector<1x3x8x64xf32>
    %134 = vector.shape_cast %133 : vector<1x3x8x64xf32> to vector<3x8x64xf32>
    %cst_46 = arith.constant dense<0.000000e+00> : vector<8x64xf32>
    %135 = tpu.matmul %129, %7, %cst_46 {dimension_numbers = #tpu.dot_dimension_numbers<[1], [0], [0], [1], [0, 0, 1, 1], [], []>} : vector<8x64xf32>, vector<64x64xf32>, vector<8x64xf32> -> vector<8x64xf32>
    %cst_47 = arith.constant dense<0.000000e+00> : vector<8x64xf32>
    %136 = tpu.matmul %129, %9, %cst_47 {dimension_numbers = #tpu.dot_dimension_numbers<[1], [0], [0], [1], [0, 0, 1, 1], [], []>} : vector<8x64xf32>, vector<64x64xf32>, vector<8x64xf32> -> vector<8x64xf32>
    %cst_48 = arith.constant dense<0.000000e+00> : vector<8x64xf32>
    %137 = tpu.matmul %129, %11, %cst_48 {dimension_numbers = #tpu.dot_dimension_numbers<[1], [0], [0], [1], [0, 0, 1, 1], [], []>} : vector<8x64xf32>, vector<64x64xf32>, vector<8x64xf32> -> vector<8x64xf32>
    %138 = arith.addf %137, %14 : vector<8x64xf32>
    %139 = vector.extract_strided_slice %134 {offsets = [0, 0, 0], sizes = [1, 8, 64], strides = [1, 1, 1]} : vector<3x8x64xf32> to vector<1x8x64xf32>
    %140 = vector.shape_cast %139 : vector<1x8x64xf32> to vector<8x64xf32>
    %141 = arith.addf %140, %135 : vector<8x64xf32>
    %142 = arith.negf %141 : vector<8x64xf32>
    %143 = math.exp %142 : vector<8x64xf32>
    %cst_49 = arith.constant 1.000000e+00 : f32
    %144 = vector.broadcast %cst_49 : f32 to vector<8x64xf32>
    %145 = arith.addf %144, %143 : vector<8x64xf32>
    %146 = arith.divf %144, %145 : vector<8x64xf32>
    %147 = vector.extract_strided_slice %134 {offsets = [1, 0, 0], sizes = [1, 8, 64], strides = [1, 1, 1]} : vector<3x8x64xf32> to vector<1x8x64xf32>
    %148 = vector.shape_cast %147 : vector<1x8x64xf32> to vector<8x64xf32>
    %149 = arith.addf %148, %136 : vector<8x64xf32>
    %150 = arith.negf %149 : vector<8x64xf32>
    %151 = math.exp %150 : vector<8x64xf32>
    %cst_50 = arith.constant 1.000000e+00 : f32
    %152 = vector.broadcast %cst_50 : f32 to vector<8x64xf32>
    %153 = arith.addf %152, %151 : vector<8x64xf32>
    %154 = arith.divf %152, %153 : vector<8x64xf32>
    %155 = vector.extract_strided_slice %134 {offsets = [2, 0, 0], sizes = [1, 8, 64], strides = [1, 1, 1]} : vector<3x8x64xf32> to vector<1x8x64xf32>
    %156 = vector.shape_cast %155 : vector<1x8x64xf32> to vector<8x64xf32>
    %157 = arith.mulf %146, %138 : vector<8x64xf32>
    %158 = arith.addf %156, %157 : vector<8x64xf32>
    %159 = math.tanh %158 : vector<8x64xf32>
    %cst_51 = arith.constant 1.000000e+00 : f32
    %160 = vector.broadcast %cst_51 : f32 to vector<8x64xf32>
    %161 = arith.subf %160, %154 : vector<8x64xf32>
    %162 = arith.mulf %161, %159 : vector<8x64xf32>
    %163 = arith.mulf %154, %129 : vector<8x64xf32>
    %164 = arith.addf %162, %163 : vector<8x64xf32>
    %165 = vector.broadcast %131 : i32 to vector<8x64xi32>
    %166 = arith.cmpi slt, %165, %5 : vector<8x64xi32>
    %167 = arith.select %166, %164, %129 : vector<8x64xi1>, vector<8x64xf32>
    %c4_i32_52 = arith.constant 4 : i32
    %c0_53 = arith.constant 0 : index
    %c0_54 = arith.constant 0 : index
    %168 = vector.load %arg8[%c0_53, %c0_54] : memref<8x64xf32, #tpu.memory_space<vmem>>, vector<8x64xf32>
    tpu.vector_store %arg8[%c0_53, %c0_54], %167 {strides = array<i32>} : memref<8x64xf32, #tpu.memory_space<vmem>>, vector<8x64xf32>,
    %c1_i32_55 = arith.constant 1 : i32
    %169 = arith.cmpi eq, %arg0, %c1_i32_55 : i32
    %170 = arith.extui %169 : i1 to i32
    %c0_i32_56 = arith.constant 0 : i32
    %171 = arith.cmpi ne, %170, %c0_i32_56 : i32
    scf.if %171 {
      %cst_57 = arith.constant 0.000000e+00 : f32
      %172 = vector.broadcast %cst_57 : f32 to vector<8x64xf32>
      %173 = arith.maximumf %167, %172 : vector<8x64xf32>
      %c0_58 = arith.constant 0 : index
      %c0_59 = arith.constant 0 : index
      %174 = vector.load %arg5[%c0_58, %c0_59] : memref<64x128xf32, #tpu.memory_space<vmem>>, vector<64x128xf32>
      %cst_60 = arith.constant dense<0.000000e+00> : vector<8x128xf32>
      %175 = tpu.matmul %173, %174, %cst_60 {dimension_numbers = #tpu.dot_dimension_numbers<[1], [0], [0], [1], [0, 0, 1, 1], [], []>} : vector<8x64xf32>, vector<64x128xf32>, vector<8x128xf32> -> vector<8x128xf32>
      %c0_61 = arith.constant 0 : index
      %c0_62 = arith.constant 0 : index
      %176 = vector.load %arg6[%c0_61, %c0_62] : memref<1x128xf32, #tpu.memory_space<vmem>>, vector<1x128xf32>
      %177 = vector.broadcast %176 : vector<1x128xf32> to vector<8x128xf32>
      %178 = arith.addf %175, %177 : vector<8x128xf32>
      %179 = arith.mulf %178, %178 : vector<8x128xf32>
      %cst_63 = arith.constant dense<0.000000e+00> : vector<8xf32>
      %180 = vector.multi_reduction <add>, %179, %cst_63 [1] : vector<8x128xf32> to vector<8xf32>
      %181 = vector.shape_cast %180 : vector<8xf32> to vector<8x1xf32>
      %cst_64 = arith.constant 9.99999996E-13 : f32
      %182 = vector.broadcast %cst_64 : f32 to vector<8x1xf32>
      %183 = arith.addf %181, %182 : vector<8x1xf32>
      %184 = math.rsqrt %183 : vector<8x1xf32>
      %185 = vector.broadcast %184 : vector<8x1xf32> to vector<8x128xf32>
      %186 = arith.mulf %178, %185 : vector<8x128xf32>
      %c0_65 = arith.constant 0 : index
      %c0_66 = arith.constant 0 : index
      %187 = vector.load %arg7[%c0_65, %c0_66] : memref<8x128xf32, #tpu.memory_space<vmem>>, vector<8x128xf32>
      tpu.vector_store %arg7[%c0_65, %c0_66], %186 {strides = array<i32>} : memref<8x128xf32, #tpu.memory_space<vmem>>, vector<8x128xf32>,
    } else {
    }
    return
  }
  func.func @transform_0(%arg0: i32) -> (i32, i32, i32, i32) {
    %c0_i32 = arith.constant 0 : i32
    %c0_i32_0 = arith.constant 0 : i32
    %c0_i32_1 = arith.constant 0 : i32
    %c0_i32_2 = arith.constant 0 : i32
    return %arg0, %c0_i32, %c0_i32_0, %c0_i32_1 : i32, i32, i32, i32
  }
  func.func @transform_1(%arg0: i32) -> (i32, i32) {
    %c0_i32 = arith.constant 0 : i32
    %c0_i32_0 = arith.constant 0 : i32
    %c0_i32_1 = arith.constant 0 : i32
    return %c0_i32, %c0_i32_0 : i32, i32
  }
  func.func @transform_2(%arg0: i32) -> (i32, i32, i32) {
    %c0_i32 = arith.constant 0 : i32
    %c0_i32_0 = arith.constant 0 : i32
    %c0_i32_1 = arith.constant 0 : i32
    %c0_i32_2 = arith.constant 0 : i32
    return %c0_i32, %c0_i32_0, %c0_i32_1 : i32, i32, i32
  }
  func.func @transform_3(%arg0: i32) -> (i32, i32) {
    %c0_i32 = arith.constant 0 : i32
    %c0_i32_0 = arith.constant 0 : i32
    %c0_i32_1 = arith.constant 0 : i32
    return %c0_i32, %c0_i32_0 : i32, i32
  }
  func.func @transform_4(%arg0: i32) -> (i32, i32) {
    %c0_i32 = arith.constant 0 : i32
    %c0_i32_0 = arith.constant 0 : i32
    %c0_i32_1 = arith.constant 0 : i32
    return %c0_i32, %c0_i32_0 : i32, i32
  }
  func.func @transform_5(%arg0: i32) -> (i32, i32) {
    %c0_i32 = arith.constant 0 : i32
    %c0_i32_0 = arith.constant 0 : i32
    %c0_i32_1 = arith.constant 0 : i32
    return %c0_i32, %c0_i32_0 : i32, i32
  }
  func.func @transform_6(%arg0: i32) -> (i32, i32) {
    %c0_i32 = arith.constant 0 : i32
    %c0_i32_0 = arith.constant 0 : i32
    %c0_i32_1 = arith.constant 0 : i32
    return %c0_i32, %c0_i32_0 : i32, i32
  }
}

</mosaic_0001>

<llo_original>
// kernel: rnn_word_encoder.1
$region0: #{rnn_word_encoder.1}
  #allocation0 [shape = 'u32[]', space=smem, size = 0x4, offset = 0x4, fixed_abs, tag = 'smem constant byte address 0x4 - core index']
  #allocation1 [shape = 'u32[144,128]{1,0:T(1,128)}', space=vmem, size = 0x12000, scoped, tag = 'internal scratch']
  #allocation2 [shape = 'f32[8,64]{1,0:T(8,128)}', space=vmem, size = 0x1000, scoped, tag = 'scratch operand']
  %s0 = inlined_call_operand.vmem [shape: f32[8,3,8,64], index: 0, kind: input, shape index: {}]
  %s1 = inlined_call_operand.vmem [shape: s32[8,1], index: 1, kind: input, shape index: {}]
  %s2 = inlined_call_operand.vmem [shape: f32[3,64,64], index: 2, kind: input, shape index: {}]
  %s3 = inlined_call_operand.vmem [shape: f32[1,64], index: 3, kind: input, shape index: {}]
  %s4 = inlined_call_operand.vmem [shape: f32[64,128], index: 4, kind: input, shape index: {}]
  %s5 = inlined_call_operand.vmem [shape: f32[1,128], index: 5, kind: input, shape index: {}]
  %s6 = inlined_call_operand.hbm [shape: f32[8,128], index: 6, kind: output, shape index: {}]
  %s7 = sld [smem:[#allocation0]]
  $region65: #{rnn_word_encoder.1} parent=0
    _
  %s9 = ssub.s32 1, %s7
  %s10 = scalar_select 0, %s9, %s7
  $region1: #{rnn_word_encoder.1} parent=0
    #allocation3 [shape = 'u8[4096]{0}', space=vmem, size = 0x1000, scoped, tag = 'output window, operand 0, single buffered']
    #allocation4 [shape = 's32[2]{0}', space=sflag, size = 0x8, scoped, tag = 'scoped memory for rnn_word_encoder.1']
    %11 = vsyncpa [#allocation4], 0
    loop: start=0, step=1, limit=4
    $region2: #{rnn_word_encoder.1} parent=1 // loop_pre_header
      _
    $region3: #{rnn_word_encoder.1} parent=1 // loop_header
      %s13 = sphi 0, %s17
      %p14 = scmp.ge.s32.totalorder %s13, 4
      %s23 = sphi 0, %s25
      %s26 = sphi 0, %s23
      %s27 = sphi 0, %s26
      %s43 = sphi 0, %s27
      %s47 = sphi 0, %s47
      %s49 = sphi 0, %s47
      %s50 = sphi 0, %s49
      %s64 = sphi 0, %s50
      %s68 = sphi 0, %s68
      %s70 = sphi 0, %s68
      %s71 = sphi 0, %s70
      %s85 = sphi 0, %s71
      %s89 = sphi 0, %s89
      %s91 = sphi 0, %s89
      %s92 = sphi 0, %s91
      %s106 = sphi 0, %s92
      %s110 = sphi 0, %s110
      %s112 = sphi 0, %s110
      %s113 = sphi 0, %s112
      %s127 = sphi 0, %s113
      %s131 = sphi 0, %s131
      %s133 = sphi 0, %s131
      %s134 = sphi 0, %s133
      %s148 = sphi 0, %s134
      %s152 = sphi 0, %s152
      %s154 = sphi 0, %s152
      %s155 = sphi 0, %s154
      %s169 = sphi 0, %s155
    $region4: #{rnn_word_encoder.1} parent=1 // loop_header_branch
      %16 = sbr.rel (%p14) target = $region8
    $region5: #{rnn_word_encoder.1} parent=1 // loop_body
      %s18 = ssub.s32 %s13, 1
      %s19 = ssub.s32 %s13, 2
      %s20 = sadd.s32 %s13, 1
      %s21 = ssub.s32 %s13, %s20
      %p22 = scmp.eq.s32.totalorder %s21, 0
      %s24 = sadd.s32 %s23, 1
      %s25 = scalar_select %p22, %s23, %s24
      %p28 = pneg %p22
      %p29 = scmp.eq.s32.totalorder %s13, 1
      %p30 = por %p28, %p29
      %p31 = scmp.ne.s32.totalorder %s23, %s26
      %p32 = scmp.eq.s32.totalorder %s13, 0
      %p33 = por %p31, %p32
      %p34 = scmp.ne.s32.totalorder %s23, %s26
      %p35 = scmp.eq.s32.totalorder %s18, 1
      %p36 = por %p34, %p35
      %p37 = scmp.ne.s32.totalorder %s26, %s27
      %p38 = scmp.eq.s32.totalorder %s18, 0
      %p39 = por %p37, %p38
      %p40 = scmp.ne.s32.totalorder %s26, %s27
      %p41 = scmp.eq.s32.totalorder %s19, 1
      %p42 = por %p40, %p41
      %p44 = scmp.ne.s32.totalorder %s27, %s43
      %p45 = scmp.eq.s32.totalorder %s19, 0
      %p46 = por %p44, %p45
      %s48 = sadd.s32 %s47, 1
      %p51 = scmp.eq.s32.totalorder %s13, 1
      %p52 = scmp.ne.s32.totalorder %s47, %s49
      %p53 = scmp.eq.s32.totalorder %s13, 0
      %p54 = por %p52, %p53
      %p55 = scmp.ne.s32.totalorder %s47, %s49
      %p56 = scmp.eq.s32.totalorder %s18, 1
      %p57 = por %p55, %p56
      %p58 = scmp.ne.s32.totalorder %s49, %s50
      %p59 = scmp.eq.s32.totalorder %s18, 0
      %p60 = por %p58, %p59
      %p61 = scmp.ne.s32.totalorder %s49, %s50
      %p62 = scmp.eq.s32.totalorder %s19, 1
      %p63 = por %p61, %p62
      %p65 = scmp.ne.s32.totalorder %s50, %s64
      %p66 = scmp.eq.s32.totalorder %s19, 0
      %p67 = por %p65, %p66
      %s69 = sadd.s32 %s68, 1
      %p72 = scmp.eq.s32.totalorder %s13, 1
      %p73 = scmp.ne.s32.totalorder %s68, %s70
      %p74 = scmp.eq.s32.totalorder %s13, 0
      %p75 = por %p73, %p74
      %p76 = scmp.ne.s32.totalorder %s68, %s70
      %p77 = scmp.eq.s32.totalorder %s18, 1
      %p78 = por %p76, %p77
      %p79 = scmp.ne.s32.totalorder %s70, %s71
      %p80 = scmp.eq.s32.totalorder %s18, 0
      %p81 = por %p79, %p80
      %p82 = scmp.ne.s32.totalorder %s70, %s71
      %p83 = scmp.eq.s32.totalorder %s19, 1
      %p84 = por %p82, %p83
      %p86 = scmp.ne.s32.totalorder %s71, %s85
      %p87 = scmp.eq.s32.totalorder %s19, 0
      %p88 = por %p86, %p87
      %s90 = sadd.s32 %s89, 1
      %p93 = scmp.eq.s32.totalorder %s13, 1
      %p94 = scmp.ne.s32.totalorder %s89, %s91
      %p95 = scmp.eq.s32.totalorder %s13, 0
      %p96 = por %p94, %p95
      %p97 = scmp.ne.s32.totalorder %s89, %s91
      %p98 = scmp.eq.s32.totalorder %s18, 1
      %p99 = por %p97, %p98
      %p100 = scmp.ne.s32.totalorder %s91, %s92
      %p101 = scmp.eq.s32.totalorder %s18, 0
      %p102 = por %p100, %p101
      %p103 = scmp.ne.s32.totalorder %s91, %s92
      %p104 = scmp.eq.s32.totalorder %s19, 1
      %p105 = por %p103, %p104
      %p107 = scmp.ne.s32.totalorder %s92, %s106
      %p108 = scmp.eq.s32.totalorder %s19, 0
      %p109 = por %p107, %p108
      %s111 = sadd.s32 %s110, 1
      %p114 = scmp.eq.s32.totalorder %s13, 1
      %p115 = scmp.ne.s32.totalorder %s110, %s112
      %p116 = scmp.eq.s32.totalorder %s13, 0
      %p117 = por %p115, %p116
      %p118 = scmp.ne.s32.totalorder %s110, %s112
      %p119 = scmp.eq.s32.totalorder %s18, 1
      %p120 = por %p118, %p119
      %p121 = scmp.ne.s32.totalorder %s112, %s113
      %p122 = scmp.eq.s32.totalorder %s18, 0
      %p123 = por %p121, %p122
      %p124 = scmp.ne.s32.totalorder %s112, %s113
      %p125 = scmp.eq.s32.totalorder %s19, 1
      %p126 = por %p124, %p125
      %p128 = scmp.ne.s32.totalorder %s113, %s127
      %p129 = scmp.eq.s32.totalorder %s19, 0
      %p130 = por %p128, %p129
      %s132 = sadd.s32 %s131, 1
      %p135 = scmp.eq.s32.totalorder %s13, 1
      %p136 = scmp.ne.s32.totalorder %s131, %s133
      %p137 = scmp.eq.s32.totalorder %s13, 0
      %p138 = por %p136, %p137
      %p139 = scmp.ne.s32.totalorder %s131, %s133
      %p140 = scmp.eq.s32.totalorder %s18, 1
      %p141 = por %p139, %p140
      %p142 = scmp.ne.s32.totalorder %s133, %s134
      %p143 = scmp.eq.s32.totalorder %s18, 0
      %p144 = por %p142, %p143
      %p145 = scmp.ne.s32.totalorder %s133, %s134
      %p146 = scmp.eq.s32.totalorder %s19, 1
      %p147 = por %p145, %p146
      %p149 = scmp.ne.s32.totalorder %s134, %s148
      %p150 = scmp.eq.s32.totalorder %s19, 0
      %p151 = por %p149, %p150
      %s153 = sadd.s32 %s152, 1
      %p156 = scmp.eq.s32.totalorder %s13, 1
      %p157 = scmp.ne.s32.totalorder %s152, %s154
      %p158 = scmp.eq.s32.totalorder %s13, 0
      %p159 = por %p157, %p158
      %p160 = scmp.ne.s32.totalorder %s152, %s154
      %p161 = scmp.eq.s32.totalorder %s18, 1
      %p162 = por %p160, %p161
      %p163 = scmp.ne.s32.totalorder %s154, %s155
      %p164 = scmp.eq.s32.totalorder %s18, 0
      %p165 = por %p163, %p164
      %p166 = scmp.ne.s32.totalorder %s154, %s155
      %p167 = scmp.eq.s32.totalorder %s19, 1
      %p168 = por %p166, %p167
      %p170 = scmp.ne.s32.totalorder %s155, %s169
      %p171 = scmp.eq.s32.totalorder %s19, 0
      %p172 = por %p170, %p171
      %p173 = scmp.le.s32.totalorder 1, %s13
      %p174 = scmp.lt.s32.totalorder %s13, 3
      %p175 = pnand %p173, %p174
      %p176 = pneg %p175
      // Predicated region
      $region9: #{rnn_word_encoder.1} parent=5 // pred_check
        _
      $region10: #{rnn_word_encoder.1} parent=5 // pred_check_branch
        %178 = sbr.rel (%p175) target = $region12
      $region11: #{rnn_word_encoder.1} parent=5 // pred_region
        %s179 = ssub.s32 %s13, 1
        // Predicated region
        $region13: #{rnn_word_encoder.1} parent=11 // pred_check
          %p180 = pneg %p60
        $region14: #{rnn_word_encoder.1} parent=11 // pred_check_branch
          %182 = sbr.rel (%p180) target = $region16
        $region15: #{rnn_word_encoder.1} parent=11 // pred_region
          _
        $region16: #{rnn_word_encoder.1} parent=11 // pred_fallthru
          _
        // Predicated region
        $region17: #{rnn_word_encoder.1} parent=11 // pred_check
          %p183 = pneg %p81
        $region18: #{rnn_word_encoder.1} parent=11 // pred_check_branch
          %185 = sbr.rel (%p183) target = $region20
        $region19: #{rnn_word_encoder.1} parent=11 // pred_region
          _
        $region20: #{rnn_word_encoder.1} parent=11 // pred_fallthru
          _
        // Predicated region
        $region21: #{rnn_word_encoder.1} parent=11 // pred_check
          %p186 = pneg %p102
        $region22: #{rnn_word_encoder.1} parent=11 // pred_check_branch
          %188 = sbr.rel (%p186) target = $region24
        $region23: #{rnn_word_encoder.1} parent=11 // pred_region
          _
        $region24: #{rnn_word_encoder.1} parent=11 // pred_fallthru
          _
        // Predicated region
        $region25: #{rnn_word_encoder.1} parent=11 // pred_check
          %p189 = pneg %p123
        $region26: #{rnn_word_encoder.1} parent=11 // pred_check_branch
          %191 = sbr.rel (%p189) target = $region28
        $region27: #{rnn_word_encoder.1} parent=11 // pred_region
          _
        $region28: #{rnn_word_encoder.1} parent=11 // pred_fallthru
          _
        // Predicated region
        $region29: #{rnn_word_encoder.1} parent=11 // pred_check
          %p192 = pneg %p144
        $region30: #{rnn_word_encoder.1} parent=11 // pred_check_branch
          %194 = sbr.rel (%p192) target = $region32
        $region31: #{rnn_word_encoder.1} parent=11 // pred_region
          _
        $region32: #{rnn_word_encoder.1} parent=11 // pred_fallthru
          _
      $region12: #{rnn_word_encoder.1} parent=5 // pred_fallthru
        _
      %p195 = scmp.lt.s32.totalorder %s13, 2
      // Predicated region
      $region33: #{rnn_word_encoder.1} parent=5 // pred_check
        %p196 = pneg %p195
      $region34: #{rnn_word_encoder.1} parent=5 // pred_check_branch
        %198 = sbr.rel (%p196) target = $region36
      $region35: #{rnn_word_encoder.1} parent=5 // pred_region
        // Predicated region
        $region37: #{rnn_word_encoder.1} parent=35 // pred_check
          %p199 = pneg %p33
        $region38: #{rnn_word_encoder.1} parent=35 // pred_check_branch
          %201 = sbr.rel (%p199) target = $region40
        $region39: #{rnn_word_encoder.1} parent=35 // pred_region
          %s202 = smul.u32 4, %s13
          %p203 = scmp.lt.s32.totalorder %s202, 7
          %s204 = scalar_select %p203, %s202, 7
          %s205 = smul.addr %s204, 3
          %s206 = smul.addr %s205, 8
          %s207 = scalar_lea.vmem %s0, %s206
          %s208 = smul.u32 4, %s13
        $region40: #{rnn_word_encoder.1} parent=35 // pred_fallthru
          _
      $region36: #{rnn_word_encoder.1} parent=5 // pred_fallthru
        _
      %p209 = scmp.le.s32.totalorder 1, %s13
      %p210 = scmp.lt.s32.totalorder %s13, 3
      %p211 = pnand %p209, %p210
      %p212 = pneg %p211
      // Predicated region
      $region41: #{rnn_word_encoder.1} parent=5 // pred_check
        _
      $region42: #{rnn_word_encoder.1} parent=5 // pred_check_branch
        %214 = sbr.rel (%p211) target = $region44
      $region43: #{rnn_word_encoder.1} parent=5 // pred_region
        %s215 = ssub.s32 %s13, 1
        %s216 = smul.u32 4, %s18
        %p217 = scmp.lt.s32.totalorder %s216, 7
        %s218 = scalar_select %p217, %s216, 7
        %s219 = smul.addr %s218, 3
        %s220 = smul.addr %s219, 8
        %s221 = scalar_lea.vmem %s0, %s220
        %p222 = pneg %p39
        %p223 = pneg %p36
        %p224 = pneg %p60
        %p225 = pneg %p57
        %p226 = pneg %p81
        %p227 = pneg %p78
        %p228 = pneg %p102
        %p229 = pneg %p99
        %p230 = pneg %p123
        %p231 = pneg %p120
        %p232 = pneg %p144
        %p233 = pneg %p141
        %p234 = pneg %p165
        %p235 = pneg %p162
        %s236 = smul.u32 4, %s18
        %p237 = scmp.lt.s32.totalorder %s236, 7
        %s238 = scalar_select %p237, %s236, 7
        %s239 = smul.addr %s238, 3
        %s240 = smul.addr %s239, 8
        %s241 = scalar_lea.vmem %s0, %s240
        %s242 = smul.u32 4, %s18
        %p243 = scmp.eq.s32.totalorder %s18, 0
        // Predicated region
        $region45: #{rnn_word_encoder.1} parent=43 // pred_check
          %p244 = pneg %p243
        $region46: #{rnn_word_encoder.1} parent=43 // pred_check_branch
          %246 = sbr.rel (%p244) target = $region48
        $region47: #{rnn_word_encoder.1} parent=43 // pred_region
          %vm247 = vcmask 523264
          %248 = vst.msk [vmem:[#allocation2] sm:$0xff] %vm247, 0.0
        $region48: #{rnn_word_encoder.1} parent=43 // pred_fallthru
          _
        %v249 = vld [vmem:[%s1] sm:$0xff]
        %250 = vset.pattern.permute.xlu0 0
        %251 = vperm.xlu0 %250, %v249
        %v252 = vpop.permute.xlu0 %251
        %v253 = vld [vmem:[%s2] sm:$0xff]
        %v254 = vld [vmem:[%s2 + $0x8] sm:$0xff]
        %v255 = vld [vmem:[%s2 + $0x10] sm:$0xff]
        %v256 = vld [vmem:[%s2 + $0x18] sm:$0xff]
        %v257 = vld [vmem:[%s2 + $0x20] sm:$0xff]
        %v258 = vld [vmem:[%s2 + $0x28] sm:$0xff]
        %v259 = vld [vmem:[%s2 + $0x30] sm:$0xff]
        %v260 = vld [vmem:[%s2 + $0x38] sm:$0xff]
        %s261 = scalar_lea.vmem %s2, 64
        %v262 = vld [vmem:[%s261] sm:$0xff]
        %v263 = vld [vmem:[%s261 + $0x8] sm:$0xff]
        %v264 = vld [vmem:[%s261 + $0x10] sm:$0xff]
        %v265 = vld [vmem:[%s261 + $0x18] sm:$0xff]
        %v266 = vld [vmem:[%s261 + $0x20] sm:$0xff]
        %v267 = vld [vmem:[%s261 + $0x28] sm:$0xff]
        %v268 = vld [vmem:[%s261 + $0x30] sm:$0xff]
        %v269 = vld [vmem:[%s261 + $0x38] sm:$0xff]
        %s270 = scalar_lea.vmem %s2, 128
        %v271 = vld [vmem:[%s270] sm:$0xff]
        %v272 = vld [vmem:[%s270 + $0x8] sm:$0xff]
        %v273 = vld [vmem:[%s270 + $0x10] sm:$0xff]
        %v274 = vld [vmem:[%s270 + $0x18] sm:$0xff]
        %v275 = vld [vmem:[%s270 + $0x20] sm:$0xff]
        %v276 = vld [vmem:[%s270 + $0x28] sm:$0xff]
        %v277 = vld [vmem:[%s270 + $0x30] sm:$0xff]
        %v278 = vld [vmem:[%s270 + $0x38] sm:$0xff]
        %v279 = vld [vmem:[%s3] sm:$0x1]
        %v281 = vlaneseq
        %v282 = vshrl.u32 %v281, 7
        %v283 = vsub.s32 0, %v282
        %v284 = vrot.slane %v279, %v283
        %v286 = vld [vmem:[#allocation2] sm:$0xff]
        %s287 = smul.u32 %s18, 4
        %v288 = vld [vmem:[%s241] sm:$0xff]
        %v289 = vld [vmem:[%s241 + $0x8] sm:$0xff]
        %v290 = vld [vmem:[%s241 + $0x10] sm:$0xff]
        %vm291 = vcmask 523264
        %v293 = vsel %vm291, %v286, 0
        %295 = vmatprep.subr.mxu0 0.0
        %296 = vmatpush1.msra.mxu0 0.0
        %297 = vmatprep.subr.mxu0 0.0
        %298 = vmatpush1.msra.mxu0 0.0
        %299 = vmatprep.subr.mxu0 0.0
        %300 = vmatpush1.msra.mxu0 0.0
        %301 = vmatprep.subr.mxu0 0.0
        %302 = vmatpush1.msra.mxu0 0.0
        %303 = vmatprep.subr.mxu0 0.0
        %304 = vmatpush1.msra.mxu0 0.0
        %305 = vmatprep.subr.mxu0 0.0
        %306 = vmatpush1.msra.mxu0 0.0
        %307 = vmatprep.subr.mxu0 0.0
        %308 = vmatpush1.msra.mxu0 0.0
        %309 = vmatprep.subr.mxu0 0.0
        %310 = vmatpush1.msra.mxu0 0.0
        %311 = vmatprep.subr.mxu0 0.0
        %312 = vmatpush1.msra.mxu0 %v260
        %313 = vmatprep.subr.mxu0 0.0
        %314 = vmatpush1.msra.mxu0 %v259
        %315 = vmatprep.subr.mxu0 0.0
        %316 = vmatpush1.msra.mxu0 %v258
        %317 = vmatprep.subr.mxu0 0.0
        %318 = vmatpush1.msra.mxu0 %v257
        %319 = vmatprep.subr.mxu0 0.0
        %320 = vmatpush1.msra.mxu0 %v256
        %321 = vmatprep.subr.mxu0 0.0
        %322 = vmatpush1.msra.mxu0 %v255
        %323 = vmatprep.subr.mxu0 0.0
        %324 = vmatpush1.msra.mxu0 %v254
        %325 = vmatprep.subr.mxu0 0.0
        %326 = vmatpush1.msra.mxu0 %v253
        %327 = vmatprep.subr.mxu0 0.0
        %328 = vmatpush2.msra.mxu0 0.0
        %329 = vmatprep.subr.mxu0 0.0
        %330 = vmatpush2.msra.mxu0 0.0
        %331 = vmatprep.subr.mxu0 0.0
        %332 = vmatpush2.msra.mxu0 0.0
        %333 = vmatprep.subr.mxu0 0.0
        %334 = vmatpush2.msra.mxu0 0.0
        %335 = vmatprep.subr.mxu0 0.0
        %336 = vmatpush2.msra.mxu0 0.0
        %337 = vmatprep.subr.mxu0 0.0
        %338 = vmatpush2.msra.mxu0 0.0
        %339 = vmatprep.subr.mxu0 0.0
        %340 = vmatpush2.msra.mxu0 0.0
        %341 = vmatprep.subr.mxu0 0.0
        %342 = vmatpush2.msra.mxu0 0.0
        %343 = vmatprep.subr.mxu0 0.0
        %344 = vmatpush2.msra.mxu0 0.0
        %345 = vmatprep.subr.mxu0 0.0
        %346 = vmatpush2.msra.mxu0 0.0
        %347 = vmatprep.subr.mxu0 0.0
        %348 = vmatpush2.msra.mxu0 0.0
        %349 = vmatprep.subr.mxu0 0.0
        %350 = vmatpush2.msra.mxu0 0.0
        %351 = vmatprep.subr.mxu0 0.0
        %352 = vmatpush2.msra.mxu0 0.0
        %353 = vmatprep.subr.mxu0 0.0
        %354 = vmatpush2.msra.mxu0 0.0
        %355 = vmatprep.subr.mxu0 0.0
        %356 = vmatpush2.msra.mxu0 0.0
        %357 = vmatprep.subr.mxu0 0.0
        %358 = vmatpush2.msra.mxu0 0.0
        %359 = vmatprep.mubr.f32.mxu0 0.0
        %360 = vmatmul.mubr.f32.gmra.mxu0 %v293
        %v361 = vpop.f32.mrf.mxu0
        %v362 = vadd.f32 0.0, %v361
        %v363 = vpop.f32.mrf.mxu0
        %364 = vdwg.mxu0
        %365 = vmatprep.subr.mxu0 0.0
        %366 = vmatpush1.msra.mxu0 0.0
        %367 = vmatprep.subr.mxu0 0.0
        %368 = vmatpush1.msra.mxu0 0.0
        %369 = vmatprep.subr.mxu0 0.0
        %370 = vmatpush1.msra.mxu0 0.0
        %371 = vmatprep.subr.mxu0 0.0
        %372 = vmatpush1.msra.mxu0 0.0
        %373 = vmatprep.subr.mxu0 0.0
        %374 = vmatpush1.msra.mxu0 0.0
        %375 = vmatprep.subr.mxu0 0.0
        %376 = vmatpush1.msra.mxu0 0.0
        %377 = vmatprep.subr.mxu0 0.0
        %378 = vmatpush1.msra.mxu0 0.0
        %379 = vmatprep.subr.mxu0 0.0
        %380 = vmatpush1.msra.mxu0 0.0
        %381 = vmatprep.subr.mxu0 0.0
        %382 = vmatpush1.msra.mxu0 %v269
        %383 = vmatprep.subr.mxu0 0.0
        %384 = vmatpush1.msra.mxu0 %v268
        %385 = vmatprep.subr.mxu0 0.0
        %386 = vmatpush1.msra.mxu0 %v267
        %387 = vmatprep.subr.mxu0 0.0
        %388 = vmatpush1.msra.mxu0 %v266
        %389 = vmatprep.subr.mxu0 0.0
        %390 = vmatpush1.msra.mxu0 %v265
        %391 = vmatprep.subr.mxu0 0.0
        %392 = vmatpush1.msra.mxu0 %v264
        %393 = vmatprep.subr.mxu0 0.0
        %394 = vmatpush1.msra.mxu0 %v263
        %395 = vmatprep.subr.mxu0 0.0
        %396 = vmatpush1.msra.mxu0 %v262
        %397 = vmatprep.subr.mxu0 0.0
        %398 = vmatpush2.msra.mxu0 0.0
        %399 = vmatprep.subr.mxu0 0.0
        %400 = vmatpush2.msra.mxu0 0.0
        %401 = vmatprep.subr.mxu0 0.0
        %402 = vmatpush2.msra.mxu0 0.0
        %403 = vmatprep.subr.mxu0 0.0
        %404 = vmatpush2.msra.mxu0 0.0
        %405 = vmatprep.subr.mxu0 0.0
        %406 = vmatpush2.msra.mxu0 0.0
        %407 = vmatprep.subr.mxu0 0.0
        %408 = vmatpush2.msra.mxu0 0.0
        %409 = vmatprep.subr.mxu0 0.0
        %410 = vmatpush2.msra.mxu0 0.0
        %411 = vmatprep.subr.mxu0 0.0
        %412 = vmatpush2.msra.mxu0 0.0
        %413 = vmatprep.subr.mxu0 0.0
        %414 = vmatpush2.msra.mxu0 0.0
        %415 = vmatprep.subr.mxu0 0.0
        %416 = vmatpush2.msra.mxu0 0.0
        %417 = vmatprep.subr.mxu0 0.0
        %418 = vmatpush2.msra.mxu0 0.0
        %419 = vmatprep.subr.mxu0 0.0
        %420 = vmatpush2.msra.mxu0 0.0
        %421 = vmatprep.subr.mxu0 0.0
        %422 = vmatpush2.msra.mxu0 0.0
        %423 = vmatprep.subr.mxu0 0.0
        %424 = vmatpush2.msra.mxu0 0.0
        %425 = vmatprep.subr.mxu0 0.0
        %426 = vmatpush2.msra.mxu0 0.0
        %427 = vmatprep.subr.mxu0 0.0
        %428 = vmatpush2.msra.mxu0 0.0
        %429 = vmatprep.mubr.f32.mxu0 0.0
        %430 = vmatmul.mubr.f32.gmra.mxu0 %v293
        %v431 = vpop.f32.mrf.mxu0
        %v432 = vadd.f32 0.0, %v431
        %v433 = vpop.f32.mrf.mxu0
        %434 = vdwg.mxu0
        %435 = vmatprep.subr.mxu0 0.0
        %436 = vmatpush1.msra.mxu0 0.0
        %437 = vmatprep.subr.mxu0 0.0
        %438 = vmatpush1.msra.mxu0 0.0
        %439 = vmatprep.subr.mxu0 0.0
        %440 = vmatpush1.msra.mxu0 0.0
        %441 = vmatprep.subr.mxu0 0.0
        %442 = vmatpush1.msra.mxu0 0.0
        %443 = vmatprep.subr.mxu0 0.0
        %444 = vmatpush1.msra.mxu0 0.0
        %445 = vmatprep.subr.mxu0 0.0
        %446 = vmatpush1.msra.mxu0 0.0
        %447 = vmatprep.subr.mxu0 0.0
        %448 = vmatpush1.msra.mxu0 0.0
        %449 = vmatprep.subr.mxu0 0.0
        %450 = vmatpush1.msra.mxu0 0.0
        %451 = vmatprep.subr.mxu0 0.0
        %452 = vmatpush1.msra.mxu0 %v278
        %453 = vmatprep.subr.mxu0 0.0
        %454 = vmatpush1.msra.mxu0 %v277
        %455 = vmatprep.subr.mxu0 0.0
        %456 = vmatpush1.msra.mxu0 %v276
        %457 = vmatprep.subr.mxu0 0.0
        %458 = vmatpush1.msra.mxu0 %v275
        %459 = vmatprep.subr.mxu0 0.0
        %460 = vmatpush1.msra.mxu0 %v274
        %461 = vmatprep.subr.mxu0 0.0
        %462 = vmatpush1.msra.mxu0 %v273
        %463 = vmatprep.subr.mxu0 0.0
        %464 = vmatpush1.msra.mxu0 %v272
        %465 = vmatprep.subr.mxu0 0.0
        %466 = vmatpush1.msra.mxu0 %v271
        %467 = vmatprep.subr.mxu0 0.0
        %468 = vmatpush2.msra.mxu0 0.0
        %469 = vmatprep.subr.mxu0 0.0
        %470 = vmatpush2.msra.mxu0 0.0
        %471 = vmatprep.subr.mxu0 0.0
        %472 = vmatpush2.msra.mxu0 0.0
        %473 = vmatprep.subr.mxu0 0.0
        %474 = vmatpush2.msra.mxu0 0.0
        %475 = vmatprep.subr.mxu0 0.0
        %476 = vmatpush2.msra.mxu0 0.0
        %477 = vmatprep.subr.mxu0 0.0
        %478 = vmatpush2.msra.mxu0 0.0
        %479 = vmatprep.subr.mxu0 0.0
        %480 = vmatpush2.msra.mxu0 0.0
        %481 = vmatprep.subr.mxu0 0.0
        %482 = vmatpush2.msra.mxu0 0.0
        %483 = vmatprep.subr.mxu0 0.0
        %484 = vmatpush2.msra.mxu0 0.0
        %485 = vmatprep.subr.mxu0 0.0
        %486 = vmatpush2.msra.mxu0 0.0
        %487 = vmatprep.subr.mxu0 0.0
        %488 = vmatpush2.msra.mxu0 0.0
        %489 = vmatprep.subr.mxu0 0.0
        %490 = vmatpush2.msra.mxu0 0.0
        %491 = vmatprep.subr.mxu0 0.0
        %492 = vmatpush2.msra.mxu0 0.0
        %493 = vmatprep.subr.mxu0 0.0
        %494 = vmatpush2.msra.mxu0 0.0
        %495 = vmatprep.subr.mxu0 0.0
        %496 = vmatpush2.msra.mxu0 0.0
        %497 = vmatprep.subr.mxu0 0.0
        %498 = vmatpush2.msra.mxu0 0.0
        %499 = vmatprep.mubr.f32.mxu0 0.0
        %500 = vmatmul.mubr.f32.gmra.mxu0 %v293
        %v501 = vpop.f32.mrf.mxu0
        %v502 = vadd.f32 %v284, %v501
        %v503 = vpop.f32.mrf.mxu0
        %504 = vdwg.mxu0
        %v505 = vadd.f32 %v288, %v362
        %v506 = vxor.u32 %v505, 2147483648
        %v507 = vmul.f32 %v506, 1.442695
        %v508 = vpow.pop %v507
        %v509 = vadd.f32 %v508, 1.0
        %v510 = vrcp.pop %v509
        %v511 = vmul.f32 1.0, %v510
        %v512 = vadd.f32 %v289, %v432
        %v513 = vxor.u32 %v512, 2147483648
        %v514 = vmul.f32 %v513, 1.442695
        %v515 = vpow.pop %v514
        %v516 = vadd.f32 %v515, 1.0
        %v517 = vrcp.pop %v516
        %v518 = vmul.f32 1.0, %v517
        %v519 = vmul.f32 %v511, %v502
        %v520 = vadd.f32 %v290, %v519
        %v521 = vtanh.pop %v520
        %v522 = vsub.f32 1.0, %v518
        %v523 = vmul.f32 %v522, %v521
        %v524 = vmul.f32 %v518, %v286
        %v525 = vadd.f32 %v523, %v524
        %v526 = vstv %s287
        %vm527 = vcmp.lt.s32.totalorder %v526, %v252
        %v528 = vsel %vm527, %v525, %v286
        %s529 = sadd.s32 %s287, 1
        %s530 = scalar_lea.vmem %s241, 24
        %v531 = vld [vmem:[%s530] sm:$0xff]
        %v532 = vld [vmem:[%s530 + $0x8] sm:$0xff]
        %v533 = vld [vmem:[%s530 + $0x10] sm:$0xff]
        %v535 = vsel %vm291, %v528, 0
        %537 = vmatprep.subr.mxu0 0.0
        %538 = vmatpush1.msra.mxu0 0.0
        %539 = vmatprep.subr.mxu0 0.0
        %540 = vmatpush1.msra.mxu0 0.0
        %541 = vmatprep.subr.mxu0 0.0
        %542 = vmatpush1.msra.mxu0 0.0
        %543 = vmatprep.subr.mxu0 0.0
        %544 = vmatpush1.msra.mxu0 0.0
        %545 = vmatprep.subr.mxu0 0.0
        %546 = vmatpush1.msra.mxu0 0.0
        %547 = vmatprep.subr.mxu0 0.0
        %548 = vmatpush1.msra.mxu0 0.0
        %549 = vmatprep.subr.mxu0 0.0
        %550 = vmatpush1.msra.mxu0 0.0
        %551 = vmatprep.subr.mxu0 0.0
        %552 = vmatpush1.msra.mxu0 0.0
        %553 = vmatprep.subr.mxu0 0.0
        %554 = vmatpush1.msra.mxu0 %v260
        %555 = vmatprep.subr.mxu0 0.0
        %556 = vmatpush1.msra.mxu0 %v259
        %557 = vmatprep.subr.mxu0 0.0
        %558 = vmatpush1.msra.mxu0 %v258
        %559 = vmatprep.subr.mxu0 0.0
        %560 = vmatpush1.msra.mxu0 %v257
        %561 = vmatprep.subr.mxu0 0.0
        %562 = vmatpush1.msra.mxu0 %v256
        %563 = vmatprep.subr.mxu0 0.0
        %564 = vmatpush1.msra.mxu0 %v255
        %565 = vmatprep.subr.mxu0 0.0
        %566 = vmatpush1.msra.mxu0 %v254
        %567 = vmatprep.subr.mxu0 0.0
        %568 = vmatpush1.msra.mxu0 %v253
        %569 = vmatprep.subr.mxu0 0.0
        %570 = vmatpush2.msra.mxu0 0.0
        %571 = vmatprep.subr.mxu0 0.0
        %572 = vmatpush2.msra.mxu0 0.0
        %573 = vmatprep.subr.mxu0 0.0
        %574 = vmatpush2.msra.mxu0 0.0
        %575 = vmatprep.subr.mxu0 0.0
        %576 = vmatpush2.msra.mxu0 0.0
        %577 = vmatprep.subr.mxu0 0.0
        %578 = vmatpush2.msra.mxu0 0.0
        %579 = vmatprep.subr.mxu0 0.0
        %580 = vmatpush2.msra.mxu0 0.0
        %581 = vmatprep.subr.mxu0 0.0
        %582 = vmatpush2.msra.mxu0 0.0
        %583 = vmatprep.subr.mxu0 0.0
        %584 = vmatpush2.msra.mxu0 0.0
        %585 = vmatprep.subr.mxu0 0.0
        %586 = vmatpush2.msra.mxu0 0.0
        %587 = vmatprep.subr.mxu0 0.0
        %588 = vmatpush2.msra.mxu0 0.0
        %589 = vmatprep.subr.mxu0 0.0
        %590 = vmatpush2.msra.mxu0 0.0
        %591 = vmatprep.subr.mxu0 0.0
        %592 = vmatpush2.msra.mxu0 0.0
        %593 = vmatprep.subr.mxu0 0.0
        %594 = vmatpush2.msra.mxu0 0.0
        %595 = vmatprep.subr.mxu0 0.0
        %596 = vmatpush2.msra.mxu0 0.0
        %597 = vmatprep.subr.mxu0 0.0
        %598 = vmatpush2.msra.mxu0 0.0
        %599 = vmatprep.subr.mxu0 0.0
        %600 = vmatpush2.msra.mxu0 0.0
        %601 = vmatprep.mubr.f32.mxu0 0.0
        %602 = vmatmul.mubr.f32.gmra.mxu0 %v535
        %v603 = vpop.f32.mrf.mxu0
        %v604 = vadd.f32 0.0, %v603
        %v605 = vpop.f32.mrf.mxu0
        %606 = vdwg.mxu0
        %607 = vmatprep.subr.mxu0 0.0
        %608 = vmatpush1.msra.mxu0 0.0
        %609 = vmatprep.subr.mxu0 0.0
        %610 = vmatpush1.msra.mxu0 0.0
        %611 = vmatprep.subr.mxu0 0.0
        %612 = vmatpush1.msra.mxu0 0.0
        %613 = vmatprep.subr.mxu0 0.0
        %614 = vmatpush1.msra.mxu0 0.0
        %615 = vmatprep.subr.mxu0 0.0
        %616 = vmatpush1.msra.mxu0 0.0
        %617 = vmatprep.subr.mxu0 0.0
        %618 = vmatpush1.msra.mxu0 0.0
        %619 = vmatprep.subr.mxu0 0.0
        %620 = vmatpush1.msra.mxu0 0.0
        %621 = vmatprep.subr.mxu0 0.0
        %622 = vmatpush1.msra.mxu0 0.0
        %623 = vmatprep.subr.mxu0 0.0
        %624 = vmatpush1.msra.mxu0 %v269
        %625 = vmatprep.subr.mxu0 0.0
        %626 = vmatpush1.msra.mxu0 %v268
        %627 = vmatprep.subr.mxu0 0.0
        %628 = vmatpush1.msra.mxu0 %v267
        %629 = vmatprep.subr.mxu0 0.0
        %630 = vmatpush1.msra.mxu0 %v266
        %631 = vmatprep.subr.mxu0 0.0
        %632 = vmatpush1.msra.mxu0 %v265
        %633 = vmatprep.subr.mxu0 0.0
        %634 = vmatpush1.msra.mxu0 %v264
        %635 = vmatprep.subr.mxu0 0.0
        %636 = vmatpush1.msra.mxu0 %v263
        %637 = vmatprep.subr.mxu0 0.0
        %638 = vmatpush1.msra.mxu0 %v262
        %639 = vmatprep.subr.mxu0 0.0
        %640 = vmatpush2.msra.mxu0 0.0
        %641 = vmatprep.subr.mxu0 0.0
        %642 = vmatpush2.msra.mxu0 0.0
        %643 = vmatprep.subr.mxu0 0.0
        %644 = vmatpush2.msra.mxu0 0.0
        %645 = vmatprep.subr.mxu0 0.0
        %646 = vmatpush2.msra.mxu0 0.0
        %647 = vmatprep.subr.mxu0 0.0
        %648 = vmatpush2.msra.mxu0 0.0
        %649 = vmatprep.subr.mxu0 0.0
        %650 = vmatpush2.msra.mxu0 0.0
        %651 = vmatprep.subr.mxu0 0.0
        %652 = vmatpush2.msra.mxu0 0.0
        %653 = vmatprep.subr.mxu0 0.0
        %654 = vmatpush2.msra.mxu0 0.0
        %655 = vmatprep.subr.mxu0 0.0
        %656 = vmatpush2.msra.mxu0 0.0
        %657 = vmatprep.subr.mxu0 0.0
        %658 = vmatpush2.msra.mxu0 0.0
        %659 = vmatprep.subr.mxu0 0.0
        %660 = vmatpush2.msra.mxu0 0.0
        %661 = vmatprep.subr.mxu0 0.0
        %662 = vmatpush2.msra.mxu0 0.0
        %663 = vmatprep.subr.mxu0 0.0
        %664 = vmatpush2.msra.mxu0 0.0
        %665 = vmatprep.subr.mxu0 0.0
        %666 = vmatpush2.msra.mxu0 0.0
        %667 = vmatprep.subr.mxu0 0.0
        %668 = vmatpush2.msra.mxu0 0.0
        %669 = vmatprep.subr.mxu0 0.0
        %670 = vmatpush2.msra.mxu0 0.0
        %671 = vmatprep.mubr.f32.mxu0 0.0
        %672 = vmatmul.mubr.f32.gmra.mxu0 %v535
        %v673 = vpop.f32.mrf.mxu0
        %v674 = vadd.f32 0.0, %v673
        %v675 = vpop.f32.mrf.mxu0
        %676 = vdwg.mxu0
        %677 = vmatprep.subr.mxu0 0.0
        %678 = vmatpush1.msra.mxu0 0.0
        %679 = vmatprep.subr.mxu0 0.0
        %680 = vmatpush1.msra.mxu0 0.0
        %681 = vmatprep.subr.mxu0 0.0
        %682 = vmatpush1.msra.mxu0 0.0
        %683 = vmatprep.subr.mxu0 0.0
        %684 = vmatpush1.msra.mxu0 0.0
        %685 = vmatprep.subr.mxu0 0.0
        %686 = vmatpush1.msra.mxu0 0.0
        %687 = vmatprep.subr.mxu0 0.0
        %688 = vmatpush1.msra.mxu0 0.0
        %689 = vmatprep.subr.mxu0 0.0
        %690 = vmatpush1.msra.mxu0 0.0
        %691 = vmatprep.subr.mxu0 0.0
        %692 = vmatpush1.msra.mxu0 0.0
        %693 = vmatprep.subr.mxu0 0.0
        %694 = vmatpush1.msra.mxu0 %v278
        %695 = vmatprep.subr.mxu0 0.0
        %696 = vmatpush1.msra.mxu0 %v277
        %697 = vmatprep.subr.mxu0 0.0
        %698 = vmatpush1.msra.mxu0 %v276
        %699 = vmatprep.subr.mxu0 0.0
        %700 = vmatpush1.msra.mxu0 %v275
        %701 = vmatprep.subr.mxu0 0.0
        %702 = vmatpush1.msra.mxu0 %v274
        %703 = vmatprep.subr.mxu0 0.0
        %704 = vmatpush1.msra.mxu0 %v273
        %705 = vmatprep.subr.mxu0 0.0
        %706 = vmatpush1.msra.mxu0 %v272
        %707 = vmatprep.subr.mxu0 0.0
        %708 = vmatpush1.msra.mxu0 %v271
        %709 = vmatprep.subr.mxu0 0.0
        %710 = vmatpush2.msra.mxu0 0.0
        %711 = vmatprep.subr.mxu0 0.0
        %712 = vmatpush2.msra.mxu0 0.0
        %713 = vmatprep.subr.mxu0 0.0
        %714 = vmatpush2.msra.mxu0 0.0
        %715 = vmatprep.subr.mxu0 0.0
        %716 = vmatpush2.msra.mxu0 0.0
        %717 = vmatprep.subr.mxu0 0.0
        %718 = vmatpush2.msra.mxu0 0.0
        %719 = vmatprep.subr.mxu0 0.0
        %720 = vmatpush2.msra.mxu0 0.0
        %721 = vmatprep.subr.mxu0 0.0
        %722 = vmatpush2.msra.mxu0 0.0
        %723 = vmatprep.subr.mxu0 0.0
        %724 = vmatpush2.msra.mxu0 0.0
        %725 = vmatprep.subr.mxu0 0.0
        %726 = vmatpush2.msra.mxu0 0.0
        %727 = vmatprep.subr.mxu0 0.0
        %728 = vmatpush2.msra.mxu0 0.0
        %729 = vmatprep.subr.mxu0 0.0
        %730 = vmatpush2.msra.mxu0 0.0
        %731 = vmatprep.subr.mxu0 0.0
        %732 = vmatpush2.msra.mxu0 0.0
        %733 = vmatprep.subr.mxu0 0.0
        %734 = vmatpush2.msra.mxu0 0.0
        %735 = vmatprep.subr.mxu0 0.0
        %736 = vmatpush2.msra.mxu0 0.0
        %737 = vmatprep.subr.mxu0 0.0
        %738 = vmatpush2.msra.mxu0 0.0
        %739 = vmatprep.subr.mxu0 0.0
        %740 = vmatpush2.msra.mxu0 0.0
        %741 = vmatprep.mubr.f32.mxu0 0.0
        %742 = vmatmul.mubr.f32.gmra.mxu0 %v535
        %v743 = vpop.f32.mrf.mxu0
        %v744 = vadd.f32 %v284, %v743
        %v745 = vpop.f32.mrf.mxu0
        %746 = vdwg.mxu0
        %v747 = vadd.f32 %v531, %v604
        %v748 = vxor.u32 %v747, 2147483648
        %v749 = vmul.f32 %v748, 1.442695
        %v750 = vpow.pop %v749
        %v751 = vadd.f32 %v750, 1.0
        %v752 = vrcp.pop %v751
        %v753 = vmul.f32 1.0, %v752
        %v754 = vadd.f32 %v532, %v674
        %v755 = vxor.u32 %v754, 2147483648
        %v756 = vmul.f32 %v755, 1.442695
        %v757 = vpow.pop %v756
        %v758 = vadd.f32 %v757, 1.0
        %v759 = vrcp.pop %v758
        %v760 = vmul.f32 1.0, %v759
        %v761 = vmul.f32 %v753, %v744
        %v762 = vadd.f32 %v533, %v761
        %v763 = vtanh.pop %v762
        %v764 = vsub.f32 1.0, %v760
        %v765 = vmul.f32 %v764, %v763
        %v766 = vmul.f32 %v760, %v528
        %v767 = vadd.f32 %v765, %v766
        %v768 = vstv %s529
        %vm769 = vcmp.lt.s32.totalorder %v768, %v252
        %v770 = vsel %vm769, %v767, %v528
        %s771 = sadd.s32 %s287, 2
        %s772 = scalar_lea.vmem %s241, 48
        %v773 = vld [vmem:[%s772] sm:$0xff]
        %v774 = vld [vmem:[%s772 + $0x8] sm:$0xff]
        %v775 = vld [vmem:[%s772 + $0x10] sm:$0xff]
        %v777 = vsel %vm291, %v770, 0
        %779 = vmatprep.subr.mxu0 0.0
        %780 = vmatpush1.msra.mxu0 0.0
        %781 = vmatprep.subr.mxu0 0.0
        %782 = vmatpush1.msra.mxu0 0.0
        %783 = vmatprep.subr.mxu0 0.0
        %784 = vmatpush1.msra.mxu0 0.0
        %785 = vmatprep.subr.mxu0 0.0
        %786 = vmatpush1.msra.mxu0 0.0
        %787 = vmatprep.subr.mxu0 0.0
        %788 = vmatpush1.msra.mxu0 0.0
        %789 = vmatprep.subr.mxu0 0.0
        %790 = vmatpush1.msra.mxu0 0.0
        %791 = vmatprep.subr.mxu0 0.0
        %792 = vmatpush1.msra.mxu0 0.0
        %793 = vmatprep.subr.mxu0 0.0
        %794 = vmatpush1.msra.mxu0 0.0
        %795 = vmatprep.subr.mxu0 0.0
        %796 = vmatpush1.msra.mxu0 %v260
        %797 = vmatprep.subr.mxu0 0.0
        %798 = vmatpush1.msra.mxu0 %v259
        %799 = vmatprep.subr.mxu0 0.0
        %800 = vmatpush1.msra.mxu0 %v258
        %801 = vmatprep.subr.mxu0 0.0
        %802 = vmatpush1.msra.mxu0 %v257
        %803 = vmatprep.subr.mxu0 0.0
        %804 = vmatpush1.msra.mxu0 %v256
        %805 = vmatprep.subr.mxu0 0.0
        %806 = vmatpush1.msra.mxu0 %v255
        %807 = vmatprep.subr.mxu0 0.0
        %808 = vmatpush1.msra.mxu0 %v254
        %809 = vmatprep.subr.mxu0 0.0
        %810 = vmatpush1.msra.mxu0 %v253
        %811 = vmatprep.subr.mxu0 0.0
        %812 = vmatpush2.msra.mxu0 0.0
        %813 = vmatprep.subr.mxu0 0.0
        %814 = vmatpush2.msra.mxu0 0.0
        %815 = vmatprep.subr.mxu0 0.0
        %816 = vmatpush2.msra.mxu0 0.0
        %817 = vmatprep.subr.mxu0 0.0
        %818 = vmatpush2.msra.mxu0 0.0
        %819 = vmatprep.subr.mxu0 0.0
        %820 = vmatpush2.msra.mxu0 0.0
        %821 = vmatprep.subr.mxu0 0.0
        %822 = vmatpush2.msra.mxu0 0.0
        %823 = vmatprep.subr.mxu0 0.0
        %824 = vmatpush2.msra.mxu0 0.0
        %825 = vmatprep.subr.mxu0 0.0
        %826 = vmatpush2.msra.mxu0 0.0
        %827 = vmatprep.subr.mxu0 0.0
        %828 = vmatpush2.msra.mxu0 0.0
        %829 = vmatprep.subr.mxu0 0.0
        %830 = vmatpush2.msra.mxu0 0.0
        %831 = vmatprep.subr.mxu0 0.0
        %832 = vmatpush2.msra.mxu0 0.0
        %833 = vmatprep.subr.mxu0 0.0
        %834 = vmatpush2.msra.mxu0 0.0
        %835 = vmatprep.subr.mxu0 0.0
        %836 = vmatpush2.msra.mxu0 0.0
        %837 = vmatprep.subr.mxu0 0.0
        %838 = vmatpush2.msra.mxu0 0.0
        %839 = vmatprep.subr.mxu0 0.0
        %840 = vmatpush2.msra.mxu0 0.0
        %841 = vmatprep.subr.mxu0 0.0
        %842 = vmatpush2.msra.mxu0 0.0
        %843 = vmatprep.mubr.f32.mxu0 0.0
        %844 = vmatmul.mubr.f32.gmra.mxu0 %v777
        %v845 = vpop.f32.mrf.mxu0
        %v846 = vadd.f32 0.0, %v845
        %v847 = vpop.f32.mrf.mxu0
        %848 = vdwg.mxu0
        %849 = vmatprep.subr.mxu0 0.0
        %850 = vmatpush1.msra.mxu0 0.0
        %851 = vmatprep.subr.mxu0 0.0
        %852 = vmatpush1.msra.mxu0 0.0
        %853 = vmatprep.subr.mxu0 0.0
        %854 = vmatpush1.msra.mxu0 0.0
        %855 = vmatprep.subr.mxu0 0.0
        %856 = vmatpush1.msra.mxu0 0.0
        %857 = vmatprep.subr.mxu0 0.0
        %858 = vmatpush1.msra.mxu0 0.0
        %859 = vmatprep.subr.mxu0 0.0
        %860 = vmatpush1.msra.mxu0 0.0
        %861 = vmatprep.subr.mxu0 0.0
        %862 = vmatpush1.msra.mxu0 0.0
        %863 = vmatprep.subr.mxu0 0.0
        %864 = vmatpush1.msra.mxu0 0.0
        %865 = vmatprep.subr.mxu0 0.0
        %866 = vmatpush1.msra.mxu0 %v269
        %867 = vmatprep.subr.mxu0 0.0
        %868 = vmatpush1.msra.mxu0 %v268
        %869 = vmatprep.subr.mxu0 0.0
        %870 = vmatpush1.msra.mxu0 %v267
        %871 = vmatprep.subr.mxu0 0.0
        %872 = vmatpush1.msra.mxu0 %v266
        %873 = vmatprep.subr.mxu0 0.0
        %874 = vmatpush1.msra.mxu0 %v265
        %875 = vmatprep.subr.mxu0 0.0
        %876 = vmatpush1.msra.mxu0 %v264
        %877 = vmatprep.subr.mxu0 0.0
        %878 = vmatpush1.msra.mxu0 %v263
        %879 = vmatprep.subr.mxu0 0.0
        %880 = vmatpush1.msra.mxu0 %v262
        %881 = vmatprep.subr.mxu0 0.0
        %882 = vmatpush2.msra.mxu0 0.0
        %883 = vmatprep.subr.mxu0 0.0
        %884 = vmatpush2.msra.mxu0 0.0
        %885 = vmatprep.subr.mxu0 0.0
        %886 = vmatpush2.msra.mxu0 0.0
        %887 = vmatprep.subr.mxu0 0.0
        %888 = vmatpush2.msra.mxu0 0.0
        %889 = vmatprep.subr.mxu0 0.0
        %890 = vmatpush2.msra.mxu0 0.0
        %891 = vmatprep.subr.mxu0 0.0
        %892 = vmatpush2.msra.mxu0 0.0
        %893 = vmatprep.subr.mxu0 0.0
        %894 = vmatpush2.msra.mxu0 0.0
        %895 = vmatprep.subr.mxu0 0.0
        %896 = vmatpush2.msra.mxu0 0.0
        %897 = vmatprep.subr.mxu0 0.0
        %898 = vmatpush2.msra.mxu0 0.0
        %899 = vmatprep.subr.mxu0 0.0
        %900 = vmatpush2.msra.mxu0 0.0
        %901 = vmatprep.subr.mxu0 0.0
        %902 = vmatpush2.msra.mxu0 0.0
        %903 = vmatprep.subr.mxu0 0.0
        %904 = vmatpush2.msra.mxu0 0.0
        %905 = vmatprep.subr.mxu0 0.0
        %906 = vmatpush2.msra.mxu0 0.0
        %907 = vmatprep.subr.mxu0 0.0
        %908 = vmatpush2.msra.mxu0 0.0
        %909 = vmatprep.subr.mxu0 0.0
        %910 = vmatpush2.msra.mxu0 0.0
        %911 = vmatprep.subr.mxu0 0.0
        %912 = vmatpush2.msra.mxu0 0.0
        %913 = vmatprep.mubr.f32.mxu0 0.0
        %914 = vmatmul.mubr.f32.gmra.mxu0 %v777
        %v915 = vpop.f32.mrf.mxu0
        %v916 = vadd.f32 0.0, %v915
        %v917 = vpop.f32.mrf.mxu0
        %918 = vdwg.mxu0
        %919 = vmatprep.subr.mxu0 0.0
        %920 = vmatpush1.msra.mxu0 0.0
        %921 = vmatprep.subr.mxu0 0.0
        %922 = vmatpush1.msra.mxu0 0.0
        %923 = vmatprep.subr.mxu0 0.0
        %924 = vmatpush1.msra.mxu0 0.0
        %925 = vmatprep.subr.mxu0 0.0
        %926 = vmatpush1.msra.mxu0 0.0
        %927 = vmatprep.subr.mxu0 0.0
        %928 = vmatpush1.msra.mxu0 0.0
        %929 = vmatprep.subr.mxu0 0.0
        %930 = vmatpush1.msra.mxu0 0.0
        %931 = vmatprep.subr.mxu0 0.0
        %932 = vmatpush1.msra.mxu0 0.0
        %933 = vmatprep.subr.mxu0 0.0
        %934 = vmatpush1.msra.mxu0 0.0
        %935 = vmatprep.subr.mxu0 0.0
        %936 = vmatpush1.msra.mxu0 %v278
        %937 = vmatprep.subr.mxu0 0.0
        %938 = vmatpush1.msra.mxu0 %v277
        %939 = vmatprep.subr.mxu0 0.0
        %940 = vmatpush1.msra.mxu0 %v276
        %941 = vmatprep.subr.mxu0 0.0
        %942 = vmatpush1.msra.mxu0 %v275
        %943 = vmatprep.subr.mxu0 0.0
        %944 = vmatpush1.msra.mxu0 %v274
        %945 = vmatprep.subr.mxu0 0.0
        %946 = vmatpush1.msra.mxu0 %v273
        %947 = vmatprep.subr.mxu0 0.0
        %948 = vmatpush1.msra.mxu0 %v272
        %949 = vmatprep.subr.mxu0 0.0
        %950 = vmatpush1.msra.mxu0 %v271
        %951 = vmatprep.subr.mxu0 0.0
        %952 = vmatpush2.msra.mxu0 0.0
        %953 = vmatprep.subr.mxu0 0.0
        %954 = vmatpush2.msra.mxu0 0.0
        %955 = vmatprep.subr.mxu0 0.0
        %956 = vmatpush2.msra.mxu0 0.0
        %957 = vmatprep.subr.mxu0 0.0
        %958 = vmatpush2.msra.mxu0 0.0
        %959 = vmatprep.subr.mxu0 0.0
        %960 = vmatpush2.msra.mxu0 0.0
        %961 = vmatprep.subr.mxu0 0.0
        %962 = vmatpush2.msra.mxu0 0.0
        %963 = vmatprep.subr.mxu0 0.0
        %964 = vmatpush2.msra.mxu0 0.0
        %965 = vmatprep.subr.mxu0 0.0
        %966 = vmatpush2.msra.mxu0 0.0
        %967 = vmatprep.subr.mxu0 0.0
        %968 = vmatpush2.msra.mxu0 0.0
        %969 = vmatprep.subr.mxu0 0.0
        %970 = vmatpush2.msra.mxu0 0.0
        %971 = vmatprep.subr.mxu0 0.0
        %972 = vmatpush2.msra.mxu0 0.0
        %973 = vmatprep.subr.mxu0 0.0
        %974 = vmatpush2.msra.mxu0 0.0
        %975 = vmatprep.subr.mxu0 0.0
        %976 = vmatpush2.msra.mxu0 0.0
        %977 = vmatprep.subr.mxu0 0.0
        %978 = vmatpush2.msra.mxu0 0.0
        %979 = vmatprep.subr.mxu0 0.0
        %980 = vmatpush2.msra.mxu0 0.0
        %981 = vmatprep.subr.mxu0 0.0
        %982 = vmatpush2.msra.mxu0 0.0
        %983 = vmatprep.mubr.f32.mxu0 0.0
        %984 = vmatmul.mubr.f32.gmra.mxu0 %v777
        %v985 = vpop.f32.mrf.mxu0
        %v986 = vadd.f32 %v284, %v985
        %v987 = vpop.f32.mrf.mxu0
        %988 = vdwg.mxu0
        %v989 = vadd.f32 %v773, %v846
        %v990 = vxor.u32 %v989, 2147483648
        %v991 = vmul.f32 %v990, 1.442695
        %v992 = vpow.pop %v991
        %v993 = vadd.f32 %v992, 1.0
        %v994 = vrcp.pop %v993
        %v995 = vmul.f32 1.0, %v994
        %v996 = vadd.f32 %v774, %v916
        %v997 = vxor.u32 %v996, 2147483648
        %v998 = vmul.f32 %v997, 1.442695
        %v999 = vpow.pop %v998
        %v1000 = vadd.f32 %v999, 1.0
        %v1001 = vrcp.pop %v1000
        %v1002 = vmul.f32 1.0, %v1001
        %v1003 = vmul.f32 %v995, %v986
        %v1004 = vadd.f32 %v775, %v1003
        %v1005 = vtanh.pop %v1004
        %v1006 = vsub.f32 1.0, %v1002
        %v1007 = vmul.f32 %v1006, %v1005
        %v1008 = vmul.f32 %v1002, %v770
        %v1009 = vadd.f32 %v1007, %v1008
        %v1010 = vstv %s771
        %vm1011 = vcmp.lt.s32.totalorder %v1010, %v252
        %v1012 = vsel %vm1011, %v1009, %v770
        %s1013 = sadd.s32 %s287, 3
        %s1014 = scalar_lea.vmem %s241, 72
        %v1015 = vld [vmem:[%s1014] sm:$0xff]
        %v1016 = vld [vmem:[%s1014 + $0x8] sm:$0xff]
        %v1017 = vld [vmem:[%s1014 + $0x10] sm:$0xff]
        %v1019 = vsel %vm291, %v1012, 0
        %1021 = vmatprep.subr.mxu0 0.0
        %1022 = vmatpush1.msra.mxu0 0.0
        %1023 = vmatprep.subr.mxu0 0.0
        %1024 = vmatpush1.msra.mxu0 0.0
        %1025 = vmatprep.subr.mxu0 0.0
        %1026 = vmatpush1.msra.mxu0 0.0
        %1027 = vmatprep.subr.mxu0 0.0
        %1028 = vmatpush1.msra.mxu0 0.0
        %1029 = vmatprep.subr.mxu0 0.0
        %1030 = vmatpush1.msra.mxu0 0.0
        %1031 = vmatprep.subr.mxu0 0.0
        %1032 = vmatpush1.msra.mxu0 0.0
        %1033 = vmatprep.subr.mxu0 0.0
        %1034 = vmatpush1.msra.mxu0 0.0
        %1035 = vmatprep.subr.mxu0 0.0
        %1036 = vmatpush1.msra.mxu0 0.0
        %1037 = vmatprep.subr.mxu0 0.0
        %1038 = vmatpush1.msra.mxu0 %v260
        %1039 = vmatprep.subr.mxu0 0.0
        %1040 = vmatpush1.msra.mxu0 %v259
        %1041 = vmatprep.subr.mxu0 0.0
        %1042 = vmatpush1.msra.mxu0 %v258
        %1043 = vmatprep.subr.mxu0 0.0
        %1044 = vmatpush1.msra.mxu0 %v257
        %1045 = vmatprep.subr.mxu0 0.0
        %1046 = vmatpush1.msra.mxu0 %v256
        %1047 = vmatprep.subr.mxu0 0.0
        %1048 = vmatpush1.msra.mxu0 %v255
        %1049 = vmatprep.subr.mxu0 0.0
        %1050 = vmatpush1.msra.mxu0 %v254
        %1051 = vmatprep.subr.mxu0 0.0
        %1052 = vmatpush1.msra.mxu0 %v253
        %1053 = vmatprep.subr.mxu0 0.0
        %1054 = vmatpush2.msra.mxu0 0.0
        %1055 = vmatprep.subr.mxu0 0.0
        %1056 = vmatpush2.msra.mxu0 0.0
        %1057 = vmatprep.subr.mxu0 0.0
        %1058 = vmatpush2.msra.mxu0 0.0
        %1059 = vmatprep.subr.mxu0 0.0
        %1060 = vmatpush2.msra.mxu0 0.0
        %1061 = vmatprep.subr.mxu0 0.0
        %1062 = vmatpush2.msra.mxu0 0.0
        %1063 = vmatprep.subr.mxu0 0.0
        %1064 = vmatpush2.msra.mxu0 0.0
        %1065 = vmatprep.subr.mxu0 0.0
        %1066 = vmatpush2.msra.mxu0 0.0
        %1067 = vmatprep.subr.mxu0 0.0
        %1068 = vmatpush2.msra.mxu0 0.0
        %1069 = vmatprep.subr.mxu0 0.0
        %1070 = vmatpush2.msra.mxu0 0.0
        %1071 = vmatprep.subr.mxu0 0.0
        %1072 = vmatpush2.msra.mxu0 0.0
        %1073 = vmatprep.subr.mxu0 0.0
        %1074 = vmatpush2.msra.mxu0 0.0
        %1075 = vmatprep.subr.mxu0 0.0
        %1076 = vmatpush2.msra.mxu0 0.0
        %1077 = vmatprep.subr.mxu0 0.0
        %1078 = vmatpush2.msra.mxu0 0.0
        %1079 = vmatprep.subr.mxu0 0.0
        %1080 = vmatpush2.msra.mxu0 0.0
        %1081 = vmatprep.subr.mxu0 0.0
        %1082 = vmatpush2.msra.mxu0 0.0
        %1083 = vmatprep.subr.mxu0 0.0
        %1084 = vmatpush2.msra.mxu0 0.0
        %1085 = vmatprep.mubr.f32.mxu0 0.0
        %1086 = vmatmul.mubr.f32.gmra.mxu0 %v1019
        %v1087 = vpop.f32.mrf.mxu0
        %v1088 = vadd.f32 0.0, %v1087
        %v1089 = vpop.f32.mrf.mxu0
        %1090 = vdwg.mxu0
        %1091 = vmatprep.subr.mxu0 0.0
        %1092 = vmatpush1.msra.mxu0 0.0
        %1093 = vmatprep.subr.mxu0 0.0
        %1094 = vmatpush1.msra.mxu0 0.0
        %1095 = vmatprep.subr.mxu0 0.0
        %1096 = vmatpush1.msra.mxu0 0.0
        %1097 = vmatprep.subr.mxu0 0.0
        %1098 = vmatpush1.msra.mxu0 0.0
        %1099 = vmatprep.subr.mxu0 0.0
        %1100 = vmatpush1.msra.mxu0 0.0
        %1101 = vmatprep.subr.mxu0 0.0
        %1102 = vmatpush1.msra.mxu0 0.0
        %1103 = vmatprep.subr.mxu0 0.0
        %1104 = vmatpush1.msra.mxu0 0.0
        %1105 = vmatprep.subr.mxu0 0.0
        %1106 = vmatpush1.msra.mxu0 0.0
        %1107 = vmatprep.subr.mxu0 0.0
        %1108 = vmatpush1.msra.mxu0 %v269
        %1109 = vmatprep.subr.mxu0 0.0
        %1110 = vmatpush1.msra.mxu0 %v268
        %1111 = vmatprep.subr.mxu0 0.0
        %1112 = vmatpush1.msra.mxu0 %v267
        %1113 = vmatprep.subr.mxu0 0.0
        %1114 = vmatpush1.msra.mxu0 %v266
        %1115 = vmatprep.subr.mxu0 0.0
        %1116 = vmatpush1.msra.mxu0 %v265
        %1117 = vmatprep.subr.mxu0 0.0
        %1118 = vmatpush1.msra.mxu0 %v264
        %1119 = vmatprep.subr.mxu0 0.0
        %1120 = vmatpush1.msra.mxu0 %v263
        %1121 = vmatprep.subr.mxu0 0.0
        %1122 = vmatpush1.msra.mxu0 %v262
        %1123 = vmatprep.subr.mxu0 0.0
        %1124 = vmatpush2.msra.mxu0 0.0
        %1125 = vmatprep.subr.mxu0 0.0
        %1126 = vmatpush2.msra.mxu0 0.0
        %1127 = vmatprep.subr.mxu0 0.0
        %1128 = vmatpush2.msra.mxu0 0.0
        %1129 = vmatprep.subr.mxu0 0.0
        %1130 = vmatpush2.msra.mxu0 0.0
        %1131 = vmatprep.subr.mxu0 0.0
        %1132 = vmatpush2.msra.mxu0 0.0
        %1133 = vmatprep.subr.mxu0 0.0
        %1134 = vmatpush2.msra.mxu0 0.0
        %1135 = vmatprep.subr.mxu0 0.0
        %1136 = vmatpush2.msra.mxu0 0.0
        %1137 = vmatprep.subr.mxu0 0.0
        %1138 = vmatpush2.msra.mxu0 0.0
        %1139 = vmatprep.subr.mxu0 0.0
        %1140 = vmatpush2.msra.mxu0 0.0
        %1141 = vmatprep.subr.mxu0 0.0
        %1142 = vmatpush2.msra.mxu0 0.0
        %1143 = vmatprep.subr.mxu0 0.0
        %1144 = vmatpush2.msra.mxu0 0.0
        %1145 = vmatprep.subr.mxu0 0.0
        %1146 = vmatpush2.msra.mxu0 0.0
        %1147 = vmatprep.subr.mxu0 0.0
        %1148 = vmatpush2.msra.mxu0 0.0
        %1149 = vmatprep.subr.mxu0 0.0
        %1150 = vmatpush2.msra.mxu0 0.0
        %1151 = vmatprep.subr.mxu0 0.0
        %1152 = vmatpush2.msra.mxu0 0.0
        %1153 = vmatprep.subr.mxu0 0.0
        %1154 = vmatpush2.msra.mxu0 0.0
        %1155 = vmatprep.mubr.f32.mxu0 0.0
        %1156 = vmatmul.mubr.f32.gmra.mxu0 %v1019
        %v1157 = vpop.f32.mrf.mxu0
        %v1158 = vadd.f32 0.0, %v1157
        %v1159 = vpop.f32.mrf.mxu0
        %1160 = vdwg.mxu0
        %1161 = vmatprep.subr.mxu0 0.0
        %1162 = vmatpush1.msra.mxu0 0.0
        %1163 = vmatprep.subr.mxu0 0.0
        %1164 = vmatpush1.msra.mxu0 0.0
        %1165 = vmatprep.subr.mxu0 0.0
        %1166 = vmatpush1.msra.mxu0 0.0
        %1167 = vmatprep.subr.mxu0 0.0
        %1168 = vmatpush1.msra.mxu0 0.0
        %1169 = vmatprep.subr.mxu0 0.0
        %1170 = vmatpush1.msra.mxu0 0.0
        %1171 = vmatprep.subr.mxu0 0.0
        %1172 = vmatpush1.msra.mxu0 0.0
        %1173 = vmatprep.subr.mxu0 0.0
        %1174 = vmatpush1.msra.mxu0 0.0
        %1175 = vmatprep.subr.mxu0 0.0
        %1176 = vmatpush1.msra.mxu0 0.0
        %1177 = vmatprep.subr.mxu0 0.0
        %1178 = vmatpush1.msra.mxu0 %v278
        %1179 = vmatprep.subr.mxu0 0.0
        %1180 = vmatpush1.msra.mxu0 %v277
        %1181 = vmatprep.subr.mxu0 0.0
        %1182 = vmatpush1.msra.mxu0 %v276
        %1183 = vmatprep.subr.mxu0 0.0
        %1184 = vmatpush1.msra.mxu0 %v275
        %1185 = vmatprep.subr.mxu0 0.0
        %1186 = vmatpush1.msra.mxu0 %v274
        %1187 = vmatprep.subr.mxu0 0.0
        %1188 = vmatpush1.msra.mxu0 %v273
        %1189 = vmatprep.subr.mxu0 0.0
        %1190 = vmatpush1.msra.mxu0 %v272
        %1191 = vmatprep.subr.mxu0 0.0
        %1192 = vmatpush1.msra.mxu0 %v271
        %1193 = vmatprep.subr.mxu0 0.0
        %1194 = vmatpush2.msra.mxu0 0.0
        %1195 = vmatprep.subr.mxu0 0.0
        %1196 = vmatpush2.msra.mxu0 0.0
        %1197 = vmatprep.subr.mxu0 0.0
        %1198 = vmatpush2.msra.mxu0 0.0
        %1199 = vmatprep.subr.mxu0 0.0
        %1200 = vmatpush2.msra.mxu0 0.0
        %1201 = vmatprep.subr.mxu0 0.0
        %1202 = vmatpush2.msra.mxu0 0.0
        %1203 = vmatprep.subr.mxu0 0.0
        %1204 = vmatpush2.msra.mxu0 0.0
        %1205 = vmatprep.subr.mxu0 0.0
        %1206 = vmatpush2.msra.mxu0 0.0
        %1207 = vmatprep.subr.mxu0 0.0
        %1208 = vmatpush2.msra.mxu0 0.0
        %1209 = vmatprep.subr.mxu0 0.0
        %1210 = vmatpush2.msra.mxu0 0.0
        %1211 = vmatprep.subr.mxu0 0.0
        %1212 = vmatpush2.msra.mxu0 0.0
        %1213 = vmatprep.subr.mxu0 0.0
        %1214 = vmatpush2.msra.mxu0 0.0
        %1215 = vmatprep.subr.mxu0 0.0
        %1216 = vmatpush2.msra.mxu0 0.0
        %1217 = vmatprep.subr.mxu0 0.0
        %1218 = vmatpush2.msra.mxu0 0.0
        %1219 = vmatprep.subr.mxu0 0.0
        %1220 = vmatpush2.msra.mxu0 0.0
        %1221 = vmatprep.subr.mxu0 0.0
        %1222 = vmatpush2.msra.mxu0 0.0
        %1223 = vmatprep.subr.mxu0 0.0
        %1224 = vmatpush2.msra.mxu0 0.0
        %1225 = vmatprep.mubr.f32.mxu0 0.0
        %1226 = vmatmul.mubr.f32.gmra.mxu0 %v1019
        %v1227 = vpop.f32.mrf.mxu0
        %v1228 = vadd.f32 %v284, %v1227
        %v1229 = vpop.f32.mrf.mxu0
        %1230 = vdwg.mxu0
        %v1231 = vadd.f32 %v1015, %v1088
        %v1232 = vxor.u32 %v1231, 2147483648
        %v1233 = vmul.f32 %v1232, 1.442695
        %v1234 = vpow.pop %v1233
        %v1235 = vadd.f32 %v1234, 1.0
        %v1236 = vrcp.pop %v1235
        %v1237 = vmul.f32 1.0, %v1236
        %v1238 = vadd.f32 %v1016, %v1158
        %v1239 = vxor.u32 %v1238, 2147483648
        %v1240 = vmul.f32 %v1239, 1.442695
        %v1241 = vpow.pop %v1240
        %v1242 = vadd.f32 %v1241, 1.0
        %v1243 = vrcp.pop %v1242
        %v1244 = vmul.f32 1.0, %v1243
        %v1245 = vmul.f32 %v1237, %v1228
        %v1246 = vadd.f32 %v1017, %v1245
        %v1247 = vtanh.pop %v1246
        %v1248 = vsub.f32 1.0, %v1244
        %v1249 = vmul.f32 %v1248, %v1247
        %v1250 = vmul.f32 %v1244, %v1012
        %v1251 = vadd.f32 %v1249, %v1250
        %v1252 = vstv %s1013
        %vm1253 = vcmp.lt.s32.totalorder %v1252, %v252
        %v1254 = vsel %vm1253, %v1251, %v1012
        %1255 = vst.msk [vmem:[#allocation2] sm:$0xff] %vm291, %v1254
        %p1256 = scmp.eq.s32.totalorder %s18, 1
        // Predicated region
        $region49: #{rnn_word_encoder.1} parent=43 // pred_check
          %p1257 = pneg %p1256
        $region50: #{rnn_word_encoder.1} parent=43 // pred_check_branch
          %1259 = sbr.rel (%p1257) target = $region52
        $region51: #{rnn_word_encoder.1} parent=43 // pred_region
          %v1260 = vmax.f32 %v1254, 0.0
          %v1261 = vld [vmem:[%s4] sm:$0xff]
          %v1262 = vld [vmem:[%s4 + $0x8] sm:$0xff]
          %v1263 = vld [vmem:[%s4 + $0x10] sm:$0xff]
          %v1264 = vld [vmem:[%s4 + $0x18] sm:$0xff]
          %v1265 = vld [vmem:[%s4 + $0x20] sm:$0xff]
          %v1266 = vld [vmem:[%s4 + $0x28] sm:$0xff]
          %v1267 = vld [vmem:[%s4 + $0x30] sm:$0xff]
          %v1268 = vld [vmem:[%s4 + $0x38] sm:$0xff]
          %v1269 = vld [vmem:[%s5] sm:$0x1]
          %v1271 = vlaneseq
          %v1272 = vshrl.u32 %v1271, 7
          %v1273 = vsub.s32 0, %v1272
          %v1274 = vrot.slane %v1269, %v1273
          %v1277 = vsel %vm291, %v1260, 0
          %1279 = vmatprep.subr.mxu0 0.0
          %1280 = vmatpush1.msra.mxu0 0.0
          %1281 = vmatprep.subr.mxu0 0.0
          %1282 = vmatpush1.msra.mxu0 0.0
          %1283 = vmatprep.subr.mxu0 0.0
          %1284 = vmatpush1.msra.mxu0 0.0
          %1285 = vmatprep.subr.mxu0 0.0
          %1286 = vmatpush1.msra.mxu0 0.0
          %1287 = vmatprep.subr.mxu0 0.0
          %1288 = vmatpush1.msra.mxu0 0.0
          %1289 = vmatprep.subr.mxu0 0.0
          %1290 = vmatpush1.msra.mxu0 0.0
          %1291 = vmatprep.subr.mxu0 0.0
          %1292 = vmatpush1.msra.mxu0 0.0
          %1293 = vmatprep.subr.mxu0 0.0
          %1294 = vmatpush1.msra.mxu0 0.0
          %1295 = vmatprep.subr.mxu0 0.0
          %1296 = vmatpush1.msra.mxu0 %v1268
          %1297 = vmatprep.subr.mxu0 0.0
          %1298 = vmatpush1.msra.mxu0 %v1267
          %1299 = vmatprep.subr.mxu0 0.0
          %1300 = vmatpush1.msra.mxu0 %v1266
          %1301 = vmatprep.subr.mxu0 0.0
          %1302 = vmatpush1.msra.mxu0 %v1265
          %1303 = vmatprep.subr.mxu0 0.0
          %1304 = vmatpush1.msra.mxu0 %v1264
          %1305 = vmatprep.subr.mxu0 0.0
          %1306 = vmatpush1.msra.mxu0 %v1263
          %1307 = vmatprep.subr.mxu0 0.0
          %1308 = vmatpush1.msra.mxu0 %v1262
          %1309 = vmatprep.subr.mxu0 0.0
          %1310 = vmatpush1.msra.mxu0 %v1261
          %1311 = vmatprep.subr.mxu0 0.0
          %1312 = vmatpush2.msra.mxu0 0.0
          %1313 = vmatprep.subr.mxu0 0.0
          %1314 = vmatpush2.msra.mxu0 0.0
          %1315 = vmatprep.subr.mxu0 0.0
          %1316 = vmatpush2.msra.mxu0 0.0
          %1317 = vmatprep.subr.mxu0 0.0
          %1318 = vmatpush2.msra.mxu0 0.0
          %1319 = vmatprep.subr.mxu0 0.0
          %1320 = vmatpush2.msra.mxu0 0.0
          %1321 = vmatprep.subr.mxu0 0.0
          %1322 = vmatpush2.msra.mxu0 0.0
          %1323 = vmatprep.subr.mxu0 0.0
          %1324 = vmatpush2.msra.mxu0 0.0
          %1325 = vmatprep.subr.mxu0 0.0
          %1326 = vmatpush2.msra.mxu0 0.0
          %1327 = vmatprep.subr.mxu0 0.0
          %1328 = vmatpush2.msra.mxu0 0.0
          %1329 = vmatprep.subr.mxu0 0.0
          %1330 = vmatpush2.msra.mxu0 0.0
          %1331 = vmatprep.subr.mxu0 0.0
          %1332 = vmatpush2.msra.mxu0 0.0
          %1333 = vmatprep.subr.mxu0 0.0
          %1334 = vmatpush2.msra.mxu0 0.0
          %1335 = vmatprep.subr.mxu0 0.0
          %1336 = vmatpush2.msra.mxu0 0.0
          %1337 = vmatprep.subr.mxu0 0.0
          %1338 = vmatpush2.msra.mxu0 0.0
          %1339 = vmatprep.subr.mxu0 0.0
          %1340 = vmatpush2.msra.mxu0 0.0
          %1341 = vmatprep.subr.mxu0 0.0
          %1342 = vmatpush2.msra.mxu0 0.0
          %1343 = vmatprep.mubr.f32.mxu0 0.0
          %1344 = vmatmul.mubr.f32.gmra.mxu0 %v1277
          %v1345 = vpop.f32.mrf.mxu0
          %v1346 = vadd.f32 %v1274, %v1345
          %v1347 = vpop.f32.mrf.mxu0
          %1348 = vdwg.mxu0
          %v1349 = vmul.f32 %v1346, %v1346
          %1350 = vadd.xlane.f32.xlu0 %v1349
          %v1351 = vpop.xlane.xlu0 %1350
          %v1352 = vadd.f32 %v1351, 1e-12
          %v1353 = vrsqrt.pop %v1352
          %v1354 = vmul.f32 %v1346, %v1353
          %1355 = vst [vmem:[#allocation3] sm:$0xff] %v1354
        $region52: #{rnn_word_encoder.1} parent=43 // pred_fallthru
          _
        // Predicated region
        $region53: #{rnn_word_encoder.1} parent=43 // pred_check
          %p1356 = pneg %p162
        $region54: #{rnn_word_encoder.1} parent=43 // pred_check_branch
          %1358 = sbr.rel (%p1356) target = $region56
        $region55: #{rnn_word_encoder.1} parent=43 // pred_region
          %s1360 = ssub.s32 128, 128
          %1361 = vsyncadd [#allocation4], %s1360
          %s1363 = sshll.u32 [#allocation3], 4
          %s1364 = int_to_ptr.vmem [resolvable:$true] %s1363
          %1366 = dma.vmem_to_hbm [thread:$0]  %s1364, 128, %s6, [#allocation4]
        $region56: #{rnn_word_encoder.1} parent=43 // pred_fallthru
          _
        // Predicated region
        $region57: #{rnn_word_encoder.1} parent=43 // pred_check
          %p1367 = pneg %p162
        $region58: #{rnn_word_encoder.1} parent=43 // pred_check_branch
          %1369 = sbr.rel (%p1367) target = $region60
        $region59: #{rnn_word_encoder.1} parent=43 // pred_region
          %1370 = dma.done [#allocation4], 128
        $region60: #{rnn_word_encoder.1} parent=43 // pred_fallthru
          _
      $region44: #{rnn_word_encoder.1} parent=5 // pred_fallthru
        _
      %p1371 = scmp.le.s32.totalorder 2, %s13
      // Predicated region
      $region61: #{rnn_word_encoder.1} parent=5 // pred_check
        %p1372 = pneg %p1371
      $region62: #{rnn_word_encoder.1} parent=5 // pred_check_branch
        %1374 = sbr.rel (%p1372) target = $region64
      $region63: #{rnn_word_encoder.1} parent=5 // pred_region
        %s1375 = ssub.s32 %s13, 2
      $region64: #{rnn_word_encoder.1} parent=5 // pred_fallthru
        _
    $region6: #{rnn_word_encoder.1} parent=1 // loop_footer
      %s17 = sadd.s32 1, %s13
    $region7: #{rnn_word_encoder.1} parent=1 // loop_footer_branch
      %12 = sbr.rel target = $region3
    $region8: #{rnn_word_encoder.1} parent=1 // loop_exit
      _
    %1376 = vsyncpa [#allocation4], 1
    %s1377 = scalar_lea.sflag [#allocation4], 1
    %1378 = vsyncpa %s1377, 1

</llo_original>
